<compile_context>
chip_gen: v7x
topology: tpu7x:2x2x1
jax: 0.10.0
libtpu: 0.0.40
codegen_flags: <defaults>
</compile_context>

<pallas_src>
import jax
import jax.numpy as jnp
from jax import lax
from jax.experimental import pallas as pl
from jax.experimental.pallas import tpu as pltpu


def mha_kernel(x_ref, wqkv_ref, wp_ref, bias_ref, out_ref):
    # x_ref:    (B, T, C)        bf16 input
    # wqkv_ref: (3*H, C, hs)     head-batched Q|K|V weights (Q pre-scaled), bf16
    # wp_ref:   (H, hs, C)       per-head output-projection weights, bf16
    # bias_ref: (1, C)           output-projection bias, f32
    # out_ref:  (B, T, C)
    B, T, C = x_ref.shape
    G, _, hs = wqkv_ref.shape          # G = 3*H
    H = G // 3
    N = H * B                          # combined head*batch axis for attention
    BT = B * T

    xf = x_ref[...].reshape(BT, C)                              # (BT, C) bf16

    # Head-batched fused QKV projection.  Heads stay on the leading batch axis
    # for the rest of the kernel, so no lane-dim splits are ever required.
    xg = jnp.broadcast_to(xf, (G, BT, C))                       # (3H, BT, C)
    qkv = jnp.einsum('gnc,gcs->gns', xg, wqkv_ref[...],
                     preferred_element_type=jnp.float32)        # (3H, BT, hs) f32

    # Leading-dim slices are free; 1/sqrt(hs) already folded into Q weights.
    q = qkv[0:H].reshape(N, T, hs).astype(jnp.bfloat16)         # (H*B, T, hs)
    k = qkv[H:2 * H].reshape(N, T, hs).astype(jnp.bfloat16)
    v = qkv[2 * H:3 * H].reshape(N, T, hs).astype(jnp.bfloat16)

    # Scores for all heads/batches in one batched matmul, causal mask in-kernel.
    s = jnp.einsum('ntd,nsd->nts', q, k,
                   preferred_element_type=jnp.float32)          # (N, T, T) f32
    row = lax.broadcasted_iota(jnp.int32, (N, T, T), 1)
    col = lax.broadcasted_iota(jnp.int32, (N, T, T), 2)
    # NaN-safe large-negative mask; every causal row keeps its diagonal unmasked.
    s = jnp.where(col <= row, s, jnp.float32(-1e30))

    # Single numerically-stable softmax (f32); normalization deferred past p@v.
    m = jnp.max(s, axis=-1, keepdims=True)                      # (N, T, 1)
    e = jnp.exp(s - m)                                          # (N, T, T)
    denom = jnp.sum(e, axis=-1, keepdims=True)                  # (N, T, 1)

    o = jnp.einsum('nts,nsd->ntd', e.astype(jnp.bfloat16), v,
                   preferred_element_type=jnp.float32)          # (N, T, hs) f32
    o = o * pl.reciprocal(denom, approx=True)                   # EUP slot

    # TODO(synk): attention/output dropout is identity (eval mode).

    # Output projection folded per head: proj(concat_h o_h) == sum_h o_h @ wp_h.
    oh = o.reshape(H, BT, hs).astype(jnp.bfloat16)              # (H, BT, hs)
    yh = jnp.einsum('hnd,hdc->hnc', oh, wp_ref[...],
                    preferred_element_type=jnp.float32)         # (H, BT, C) f32
    y = jnp.sum(yh, axis=0) + bias_ref[...]                     # (BT, C) f32

    out_ref[...] = y.reshape(B, T, C).astype(out_ref.dtype)


def multi_head_attention(x, wq, wk, wv, wp, bp):
    """x: (B, T, C); wq/wk/wv: (H, C, hs); wp: (H, hs, C); bp: (C,)."""
    B, T, C = x.shape
    H, _, hs = wq.shape
    scale = float(hs) ** -0.5

    # Host-side prep: fold the softmax scale into the Q weights, stack Q|K|V
    # along a single leading (head-batch) axis, cast MXU operands to bf16.
    wqkv = jnp.concatenate([wq * scale, wk, wv], axis=0).astype(jnp.bfloat16)  # (3H, C, hs)
    wp3 = wp.astype(jnp.bfloat16)                                              # (H, hs, C)
    bp2 = bp.reshape(1, C).astype(jnp.float32)
    xb = x.astype(jnp.bfloat16)

    # Single grid step: at these sizes per-step pipeline overhead dominates, so
    # the whole problem (all batches) runs in one kernel invocation.
    return pl.pallas_call(
        mha_kernel,
        out_shape=jax.ShapeDtypeStruct((B, T, C), x.dtype),
        grid_spec=pltpu.PrefetchScalarGridSpec(
            num_scalar_prefetch=0,
            grid=(1,),
            in_specs=[
                pl.BlockSpec((B, T, C), lambda i: (0, 0, 0)),        # x (full)
                pl.BlockSpec((3 * H, C, hs), lambda i: (0, 0, 0)),   # fused Wqkv
                pl.BlockSpec((H, hs, C), lambda i: (0, 0, 0)),       # Wproj
                pl.BlockSpec((1, C), lambda i: (0, 0)),              # proj bias
            ],
            out_specs=pl.BlockSpec((B, T, C), lambda i: (0, 0, 0)),
        ),
        compiler_params=pltpu.CompilerParams(
            dimension_semantics=("arbitrary",)),
    )(xb, wqkv, wp3, bp2)


def mha_reference(x, wq, wk, wv, wp, bp):
    """Pure-JAX f32 reference mirroring the PyTorch forward (eval mode)."""
    hs = wq.shape[-1]
    q = jnp.einsum("btc,hcs->bhts", x, wq)
    k = jnp.einsum("btc,hcs->bhts", x, wk)
    v = jnp.einsum("btc,hcs->bhts", x, wv)
    wei = jnp.einsum("bhts,bhus->bhtu", q, k) * hs ** -0.5
    T = x.shape[1]
    tril = jnp.tril(jnp.ones((T, T), dtype=bool))
    wei = jnp.where(tril[None, None], wei, -jnp.inf)
    wei = jax.nn.softmax(wei, axis=-1)
    o = jnp.einsum("bhtu,bhus->bhts", wei, v)
    y = jnp.einsum("bhts,hsc->btc", o, wp) + bp[None, None, :]
    return y


if __name__ == "__main__":
    # Small shapes consistent with the module:
    #   batch=2, seq (block_size)=8, n_embd=32, num_heads=4, head_size=8
    B, T = 2, 8
    n_embd, num_heads, head_size = 32, 4, 8

    key = jax.random.PRNGKey(0)
    kx, kq, kk, kv, kp, kb = jax.random.split(key, 6)

    x = jax.random.normal(kx, (B, T, n_embd), dtype=jnp.float32)

    # Deterministic synthetic parameters (PyTorch Linear weight [out,in] -> stored
    # pre-transposed here as [in,out] per head).
    init = lambda k, shape, fan_in: jax.random.normal(k, shape, jnp.float32) / jnp.sqrt(fan_in)
    wq = init(kq, (num_heads, n_embd, head_size), n_embd)
    wk = init(kk, (num_heads, n_embd, head_size), n_embd)
    wv = init(kv, (num_heads, n_embd, head_size), n_embd)
    # proj: Linear(head_size*num_heads, n_embd) -> stored as [H, hs, C]
    wp = init(kp, (num_heads, head_size, n_embd), num_heads * head_size)
    bp = init(kb, (n_embd,), num_heads * head_size)

    out = multi_head_attention(x, wq, wk, wv, wp, bp)
    out = jax.block_until_ready(out)

    ref = mha_reference(x, wq, wk, wv, wp, bp)
    assert out.shape == (B, T, n_embd)
    # bf16 matmul operands vs f32 reference -> modest tolerance.
    assert jnp.allclose(out, ref, atol=5e-2, rtol=5e-2), "mismatch vs reference"

    print("KERNEL_OK")
</pallas_src>

<mosaic_0001>
module attributes {stable_mosaic.version = 11 : i64} {
  func.func @mha_kernel(%arg0: i32, %arg1: memref<2x8x32xbf16, #tpu.memory_space<vmem>>, %arg2: memref<12x32x8xbf16, #tpu.memory_space<vmem>>, %arg3: memref<4x8x32xbf16, #tpu.memory_space<vmem>>, %arg4: memref<1x32xf32, #tpu.memory_space<vmem>>, %arg5: memref<2x8x32xf32, #tpu.memory_space<vmem>>) attributes {dimension_semantics = [#tpu.dimension_semantics<arbitrary>], iteration_bounds = array<i64: 1>, scalar_prefetch = 0 : i64, scratch_operands = 0 : i64, tpu.core_type = #tpu.core_type<tc>, window_params = [{pipeline_mode = #tpu.pipeline_mode<synchronous>, transform_indices = @transform_0, window_bounds = array<i64: 2, 8, 32>}, {pipeline_mode = #tpu.pipeline_mode<synchronous>, transform_indices = @transform_1, window_bounds = array<i64: 12, 32, 8>}, {pipeline_mode = #tpu.pipeline_mode<synchronous>, transform_indices = @transform_2, window_bounds = array<i64: 4, 8, 32>}, {pipeline_mode = #tpu.pipeline_mode<synchronous>, transform_indices = @transform_3, window_bounds = array<i64: 1, 32>}, {pipeline_mode = #tpu.pipeline_mode<synchronous>, transform_indices = @transform_4, window_bounds = array<i64: 2, 8, 32>}]} {
    %c0 = arith.constant 0 : index
    %c0_0 = arith.constant 0 : index
    %c0_1 = arith.constant 0 : index
    %0 = vector.load %arg1[%c0, %c0_0, %c0_1] : memref<2x8x32xbf16, #tpu.memory_space<vmem>>, vector<2x8x32xbf16>
    %1 = vector.shape_cast %0 : vector<2x8x32xbf16> to vector<16x32xbf16>
    %2 = vector.shape_cast %1 : vector<16x32xbf16> to vector<1x16x32xbf16>
    %3 = vector.broadcast %2 : vector<1x16x32xbf16> to vector<12x16x32xbf16>
    %c0_2 = arith.constant 0 : index
    %c0_3 = arith.constant 0 : index
    %c0_4 = arith.constant 0 : index
    %4 = vector.load %arg2[%c0_2, %c0_3, %c0_4] : memref<12x32x8xbf16, #tpu.memory_space<vmem>>, vector<12x32x8xbf16>
    "tpu.trace_start"() <{level = 10 : i32, message = "gnc,gcs->gns"}> : () -> ()
    %cst = arith.constant dense<0.000000e+00> : vector<12x16x8xf32>
    %5 = tpu.matmul %3, %4, %cst {dimension_numbers = #tpu.dot_dimension_numbers<[2], [1], [1], [2], [0, 0, 0, 1, 1, 2], [0], [0]>} : vector<12x16x32xbf16>, vector<12x32x8xbf16>, vector<12x16x8xf32> -> vector<12x16x8xf32>
    "tpu.trace_stop"() : () -> ()
    %6 = vector.extract_strided_slice %5 {offsets = [0, 0, 0], sizes = [4, 16, 8], strides = [1, 1, 1]} : vector<12x16x8xf32> to vector<4x16x8xf32>
    %7 = vector.shape_cast %6 : vector<4x16x8xf32> to vector<8x8x8xf32>
    %8 = arith.truncf %7 : vector<8x8x8xf32> to vector<8x8x8xbf16>
    %9 = vector.extract_strided_slice %5 {offsets = [4, 0, 0], sizes = [4, 16, 8], strides = [1, 1, 1]} : vector<12x16x8xf32> to vector<4x16x8xf32>
    %10 = vector.shape_cast %9 : vector<4x16x8xf32> to vector<8x8x8xf32>
    %11 = arith.truncf %10 : vector<8x8x8xf32> to vector<8x8x8xbf16>
    %12 = vector.extract_strided_slice %5 {offsets = [8, 0, 0], sizes = [4, 16, 8], strides = [1, 1, 1]} : vector<12x16x8xf32> to vector<4x16x8xf32>
    %13 = vector.shape_cast %12 : vector<4x16x8xf32> to vector<8x8x8xf32>
    %14 = arith.truncf %13 : vector<8x8x8xf32> to vector<8x8x8xbf16>
    "tpu.trace_start"() <{level = 10 : i32, message = "ntd,nsd->nts"}> : () -> ()
    %cst_5 = arith.constant dense<0.000000e+00> : vector<8x8x8xf32>
    %15 = tpu.matmul %8, %11, %cst_5 {dimension_numbers = #tpu.dot_dimension_numbers<[2], [2], [1], [1], [0, 0, 0, 1, 1, 1], [0], [0]>} : vector<8x8x8xbf16>, vector<8x8x8xbf16>, vector<8x8x8xf32> -> vector<8x8x8xf32>
    "tpu.trace_stop"() : () -> ()
    %16 = tpu.iota {dimensions = array<i32: 1>} : vector<8x8x8xi32>
    %17 = tpu.iota {dimensions = array<i32: 2>} : vector<8x8x8xi32>
    %18 = arith.cmpi sle, %17, %16 : vector<8x8x8xi32>
    %cst_6 = arith.constant -1.000000e+30 : f32
    %19 = vector.broadcast %cst_6 : f32 to vector<8x8x8xf32>
    %20 = arith.select %18, %15, %19 : vector<8x8x8xi1>, vector<8x8x8xf32>
    %cst_7 = arith.constant dense<0xFF800000> : vector<8x8xf32>
    %21 = vector.multi_reduction <maximumf>, %20, %cst_7 [2] : vector<8x8x8xf32> to vector<8x8xf32>
    %22 = vector.shape_cast %21 : vector<8x8xf32> to vector<8x8x1xf32>
    %23 = vector.broadcast %22 : vector<8x8x1xf32> to vector<8x8x8xf32>
    %24 = arith.subf %20, %23 : vector<8x8x8xf32>
    %25 = math.exp %24 : vector<8x8x8xf32>
    %cst_8 = arith.constant dense<0.000000e+00> : vector<8x8xf32>
    %26 = vector.multi_reduction <add>, %25, %cst_8 [2] : vector<8x8x8xf32> to vector<8x8xf32>
    %27 = vector.shape_cast %26 : vector<8x8xf32> to vector<8x8x1xf32>
    %28 = arith.truncf %25 : vector<8x8x8xf32> to vector<8x8x8xbf16>
    "tpu.trace_start"() <{level = 10 : i32, message = "nts,nsd->ntd"}> : () -> ()
    %cst_9 = arith.constant dense<0.000000e+00> : vector<8x8x8xf32>
    %29 = tpu.matmul %28, %14, %cst_9 {dimension_numbers = #tpu.dot_dimension_numbers<[2], [1], [1], [2], [0, 0, 0, 1, 1, 2], [0], [0]>} : vector<8x8x8xbf16>, vector<8x8x8xbf16>, vector<8x8x8xf32> -> vector<8x8x8xf32>
    "tpu.trace_stop"() : () -> ()
    %30 = tpu.reciprocal %27 {approx = true} : vector<8x8x1xf32> -> vector<8x8x1xf32>
    %31 = vector.broadcast %30 : vector<8x8x1xf32> to vector<8x8x8xf32>
    %32 = arith.mulf %29, %31 : vector<8x8x8xf32>
    %33 = vector.shape_cast %32 : vector<8x8x8xf32> to vector<4x16x8xf32>
    %34 = arith.truncf %33 : vector<4x16x8xf32> to vector<4x16x8xbf16>
    %c0_10 = arith.constant 0 : index
    %c0_11 = arith.constant 0 : index
    %c0_12 = arith.constant 0 : index
    %35 = vector.load %arg3[%c0_10, %c0_11, %c0_12] : memref<4x8x32xbf16, #tpu.memory_space<vmem>>, vector<4x8x32xbf16>
    "tpu.trace_start"() <{level = 10 : i32, message = "hnd,hdc->hnc"}> : () -> ()
    %cst_13 = arith.constant dense<0.000000e+00> : vector<4x16x32xf32>
    %36 = tpu.matmul %34, %35, %cst_13 {dimension_numbers = #tpu.dot_dimension_numbers<[2], [1], [1], [2], [0, 0, 0, 1, 1, 2], [0], [0]>} : vector<4x16x8xbf16>, vector<4x8x32xbf16>, vector<4x16x32xf32> -> vector<4x16x32xf32>
    "tpu.trace_stop"() : () -> ()
    %cst_14 = arith.constant dense<0.000000e+00> : vector<16x32xf32>
    %37 = vector.multi_reduction <add>, %36, %cst_14 [0] : vector<4x16x32xf32> to vector<16x32xf32>
    %c0_15 = arith.constant 0 : index
    %c0_16 = arith.constant 0 : index
    %38 = vector.load %arg4[%c0_15, %c0_16] : memref<1x32xf32, #tpu.memory_space<vmem>>, vector<1x32xf32>
    %39 = vector.broadcast %38 : vector<1x32xf32> to vector<16x32xf32>
    %40 = arith.addf %37, %39 : vector<16x32xf32>
    %41 = vector.shape_cast %40 : vector<16x32xf32> to vector<2x8x32xf32>
    %c0_17 = arith.constant 0 : index
    %c0_18 = arith.constant 0 : index
    %c0_19 = arith.constant 0 : index
    %42 = vector.load %arg5[%c0_17, %c0_18, %c0_19] : memref<2x8x32xf32, #tpu.memory_space<vmem>>, vector<2x8x32xf32>
    tpu.vector_store %arg5[%c0_17, %c0_18, %c0_19], %41 {strides = array<i32>} : memref<2x8x32xf32, #tpu.memory_space<vmem>>, vector<2x8x32xf32>,
    return
  }
  func.func @transform_0(%arg0: i32) -> (i32, i32, i32) {
    %c0_i32 = arith.constant 0 : i32
    %c0_i32_0 = arith.constant 0 : i32
    %c0_i32_1 = arith.constant 0 : i32
    %c0_i32_2 = arith.constant 0 : i32
    return %c0_i32, %c0_i32_0, %c0_i32_1 : i32, i32, i32
  }
  func.func @transform_1(%arg0: i32) -> (i32, i32, i32) {
    %c0_i32 = arith.constant 0 : i32
    %c0_i32_0 = arith.constant 0 : i32
    %c0_i32_1 = arith.constant 0 : i32
    %c0_i32_2 = arith.constant 0 : i32
    return %c0_i32, %c0_i32_0, %c0_i32_1 : i32, i32, i32
  }
  func.func @transform_2(%arg0: i32) -> (i32, i32, i32) {
    %c0_i32 = arith.constant 0 : i32
    %c0_i32_0 = arith.constant 0 : i32
    %c0_i32_1 = arith.constant 0 : i32
    %c0_i32_2 = arith.constant 0 : i32
    return %c0_i32, %c0_i32_0, %c0_i32_1 : i32, i32, i32
  }
  func.func @transform_3(%arg0: i32) -> (i32, i32) {
    %c0_i32 = arith.constant 0 : i32
    %c0_i32_0 = arith.constant 0 : i32
    %c0_i32_1 = arith.constant 0 : i32
    return %c0_i32, %c0_i32_0 : i32, i32
  }
  func.func @transform_4(%arg0: i32) -> (i32, i32, i32) {
    %c0_i32 = arith.constant 0 : i32
    %c0_i32_0 = arith.constant 0 : i32
    %c0_i32_1 = arith.constant 0 : i32
    %c0_i32_2 = arith.constant 0 : i32
    return %c0_i32, %c0_i32_0, %c0_i32_1 : i32, i32, i32
  }
}

</mosaic_0001>

<llo_original>
// kernel: tpu_custom_call.1
$region0: #{tpu_custom_call.1}
  #allocation0 [shape = 'u32[]', space=smem, size = 0x4, offset = 0x4, fixed_abs, tag = 'smem constant byte address 0x4 - core index']
  #allocation1 [shape = 'u32[144,128]{1,0:T(1,128)}', space=vmem, size = 0x12000, scoped, tag = 'internal scratch']
  %s0 = inlined_call_operand.vmem [shape: bf16[2,8,32], index: 0, kind: input, shape index: {}]
  %s1 = inlined_call_operand.vmem [shape: bf16[12,32,8], index: 1, kind: input, shape index: {}]
  %s2 = inlined_call_operand.vmem [shape: bf16[4,8,32], index: 2, kind: input, shape index: {}]
  %s3 = inlined_call_operand.vmem [shape: f32[1,32], index: 3, kind: input, shape index: {}]
  %s4 = inlined_call_operand.hbm [shape: f32[2,8,32], index: 4, kind: output, shape index: {}]
  %s5 = sld [smem:[#allocation0]]
  $region26: #{tpu_custom_call.1} parent=0
    _
  %s7 = ssub.s32 1, %s5
  %s8 = scalar_select 0, %s7, %s5
  $region1: #{tpu_custom_call.1} parent=0
    #allocation2 [shape = 'u8[8192]{0}', space=vmem, size = 0x2000, scoped, tag = 'output window, operand 0, single buffered']
    #allocation3 [shape = 's32[1]{0}', space=sflag, size = 0x4, scoped, tag = 'scoped memory for tpu_custom_call.1']
    %9 = vsyncpa [#allocation3], 0
    // Predicated region
    $region2: #{tpu_custom_call.1} parent=1 // pred_check
      _
    $region3: #{tpu_custom_call.1} parent=1 // pred_check_branch
      %11 = sbr.rel (0) target = $region5
    $region4: #{tpu_custom_call.1} parent=1 // pred_region
      _
    $region5: #{tpu_custom_call.1} parent=1 // pred_fallthru
      _
    // Predicated region
    $region6: #{tpu_custom_call.1} parent=1 // pred_check
      _
    $region7: #{tpu_custom_call.1} parent=1 // pred_check_branch
      %13 = sbr.rel (0) target = $region9
    $region8: #{tpu_custom_call.1} parent=1 // pred_region
      _
    $region9: #{tpu_custom_call.1} parent=1 // pred_fallthru
      _
    // Predicated region
    $region10: #{tpu_custom_call.1} parent=1 // pred_check
      _
    $region11: #{tpu_custom_call.1} parent=1 // pred_check_branch
      %15 = sbr.rel (0) target = $region13
    $region12: #{tpu_custom_call.1} parent=1 // pred_region
      _
    $region13: #{tpu_custom_call.1} parent=1 // pred_fallthru
      _
    // Predicated region
    $region14: #{tpu_custom_call.1} parent=1 // pred_check
      _
    $region15: #{tpu_custom_call.1} parent=1 // pred_check_branch
      %17 = sbr.rel (0) target = $region17
    $region16: #{tpu_custom_call.1} parent=1 // pred_region
      _
    $region17: #{tpu_custom_call.1} parent=1 // pred_fallthru
      _
    %v19 = vld [vmem:[%s0] sm:$0xf]
    %v20 = vld [vmem:[%s0 + $0x4] sm:$0xf]
    %v21 = vld [vmem:[%s1] sm:$0xf]
    %v22 = vld [vmem:[%s1 + $0x4] sm:$0xf]
    %v23 = vld [vmem:[%s1 + $0x8] sm:$0xf]
    %v24 = vld [vmem:[%s1 + $0xc] sm:$0xf]
    %v25 = vld [vmem:[%s1 + $0x10] sm:$0xf]
    %v26 = vld [vmem:[%s1 + $0x14] sm:$0xf]
    %v27 = vld [vmem:[%s1 + $0x18] sm:$0xf]
    %v28 = vld [vmem:[%s1 + $0x1c] sm:$0xf]
    %v29 = vld [vmem:[%s1 + $0x20] sm:$0xf]
    %v30 = vld [vmem:[%s1 + $0x24] sm:$0xf]
    %v31 = vld [vmem:[%s1 + $0x28] sm:$0xf]
    %v32 = vld [vmem:[%s1 + $0x2c] sm:$0xf]
    %v33 = vld [vmem:[%s1 + $0x30] sm:$0xf]
    %v34 = vld [vmem:[%s1 + $0x34] sm:$0xf]
    %v35 = vld [vmem:[%s1 + $0x38] sm:$0xf]
    %v36 = vld [vmem:[%s1 + $0x3c] sm:$0xf]
    %v37 = vld [vmem:[%s1 + $0x40] sm:$0xf]
    %v38 = vld [vmem:[%s1 + $0x44] sm:$0xf]
    %v39 = vld [vmem:[%s1 + $0x48] sm:$0xf]
    %v40 = vld [vmem:[%s1 + $0x4c] sm:$0xf]
    %v41 = vld [vmem:[%s1 + $0x50] sm:$0xf]
    %v42 = vld [vmem:[%s1 + $0x54] sm:$0xf]
    %v43 = vld [vmem:[%s1 + $0x58] sm:$0xf]
    %v44 = vld [vmem:[%s1 + $0x5c] sm:$0xf]
    %v45 = vld [vmem:[%s1 + $0x60] sm:$0xf]
    %v46 = vld [vmem:[%s1 + $0x64] sm:$0xf]
    %v47 = vld [vmem:[%s1 + $0x68] sm:$0xf]
    %v48 = vld [vmem:[%s1 + $0x6c] sm:$0xf]
    %v49 = vld [vmem:[%s1 + $0x70] sm:$0xf]
    %v50 = vld [vmem:[%s1 + $0x74] sm:$0xf]
    %v51 = vld [vmem:[%s1 + $0x78] sm:$0xf]
    %v52 = vld [vmem:[%s1 + $0x7c] sm:$0xf]
    %v53 = vld [vmem:[%s1 + $0x80] sm:$0xf]
    %v54 = vld [vmem:[%s1 + $0x84] sm:$0xf]
    %v55 = vld [vmem:[%s1 + $0x88] sm:$0xf]
    %v56 = vld [vmem:[%s1 + $0x8c] sm:$0xf]
    %v57 = vld [vmem:[%s1 + $0x90] sm:$0xf]
    %v58 = vld [vmem:[%s1 + $0x94] sm:$0xf]
    %v59 = vld [vmem:[%s1 + $0x98] sm:$0xf]
    %v60 = vld [vmem:[%s1 + $0x9c] sm:$0xf]
    %v61 = vld [vmem:[%s1 + $0xa0] sm:$0xf]
    %v62 = vld [vmem:[%s1 + $0xa4] sm:$0xf]
    %v63 = vld [vmem:[%s1 + $0xa8] sm:$0xf]
    %v64 = vld [vmem:[%s1 + $0xac] sm:$0xf]
    %v65 = vld [vmem:[%s1 + $0xb0] sm:$0xf]
    %v66 = vld [vmem:[%s1 + $0xb4] sm:$0xf]
    %v67 = vld [vmem:[%s1 + $0xb8] sm:$0xf]
    %v68 = vld [vmem:[%s1 + $0xbc] sm:$0xf]
    %v71 = vunpack.c.l.b16 %v19
    %v72 = vunpack.c.l.b16 %v20
    %v73 = vpack.c.b16 %v72, %v71
    %v78 = vunpack.c.l.b16 %v21
    %v79 = vunpack.c.l.b16 %v22
    %v80 = vunpack.c.l.b16 %v23
    %v81 = vunpack.c.l.b16 %v24
    %v82 = vpack.c.b16 %v79, %v78
    %v83 = vpack.c.b16 %v81, %v80
    %vm86 = vcmask 261120
    %v88 = vsel %vm86, %v73, 0
    %90 = vmatprep.subr.bf16.mxu0 0
    %91 = vmatpush1.bf16.msra.mxu0 %v82
    %92 = vmatprep.subr.bf16.mxu0 0
    %93 = vmatpush1.bf16.msra.mxu0 %v83
    %94 = vmatprep.subr.bf16.mxu0 0
    %95 = vmatpush1.bf16.msra.mxu0 0
    %96 = vmatprep.subr.bf16.mxu0 0
    %97 = vmatpush1.bf16.msra.mxu0 0
    %98 = vmatprep.subr.bf16.mxu0 0
    %99 = vmatpush1.bf16.msra.mxu0 0
    %100 = vmatprep.subr.bf16.mxu0 0
    %101 = vmatpush1.bf16.msra.mxu0 0
    %102 = vmatprep.subr.bf16.mxu0 0
    %103 = vmatpush1.bf16.msra.mxu0 0
    %104 = vmatprep.subr.bf16.mxu0 0
    %105 = vmatpush1.bf16.msra.mxu0 0
    %106 = vmatprep.subr.bf16.mxu0 0
    %107 = vmatpush1.bf16.msra.mxu0 0
    %108 = vmatprep.subr.bf16.mxu0 0
    %109 = vmatpush1.bf16.msra.mxu0 0
    %110 = vmatprep.subr.bf16.mxu0 0
    %111 = vmatpush1.bf16.msra.mxu0 0
    %112 = vmatprep.subr.bf16.mxu0 0
    %113 = vmatpush1.bf16.msra.mxu0 0
    %114 = vmatprep.subr.bf16.mxu0 0
    %115 = vmatpush1.bf16.msra.mxu0 0
    %116 = vmatprep.subr.bf16.mxu0 0
    %117 = vmatpush1.bf16.msra.mxu0 0
    %118 = vmatprep.subr.bf16.mxu0 0
    %119 = vmatpush1.bf16.msra.mxu0 0
    %120 = vmatprep.subr.bf16.mxu0 0
    %121 = vmatpush1.bf16.msra.mxu0 0
    %122 = vmatprep.mubr.bf16.mxu0 0
    %123 = vmatmul.mubr.bf16.gmra.mrb[0].mxu0 %v88
    %v124 = vpop.f32.mrb[0].mxu0
    %v125 = vadd.f32 0.0, %v124
    %v126 = vpop.f32.mrb[0].mxu0
    %v127 = vpop.f32.mrb[0].mxu0
    %v128 = vadd.f32 0.0, %v127
    %v129 = vpop.f32.mrb[0].mxu0
    %130 = vdwg.mxu0
    %v135 = vunpack.c.l.b16 %v25
    %v136 = vunpack.c.l.b16 %v26
    %v137 = vunpack.c.l.b16 %v27
    %v138 = vunpack.c.l.b16 %v28
    %v139 = vpack.c.b16 %v136, %v135
    %v140 = vpack.c.b16 %v138, %v137
    %143 = vmatprep.subr.bf16.mxu0 0
    %144 = vmatpush1.bf16.msra.mxu0 %v139
    %145 = vmatprep.subr.bf16.mxu0 0
    %146 = vmatpush1.bf16.msra.mxu0 %v140
    %147 = vmatprep.subr.bf16.mxu0 0
    %148 = vmatpush1.bf16.msra.mxu0 0
    %149 = vmatprep.subr.bf16.mxu0 0
    %150 = vmatpush1.bf16.msra.mxu0 0
    %151 = vmatprep.subr.bf16.mxu0 0
    %152 = vmatpush1.bf16.msra.mxu0 0
    %153 = vmatprep.subr.bf16.mxu0 0
    %154 = vmatpush1.bf16.msra.mxu0 0
    %155 = vmatprep.subr.bf16.mxu0 0
    %156 = vmatpush1.bf16.msra.mxu0 0
    %157 = vmatprep.subr.bf16.mxu0 0
    %158 = vmatpush1.bf16.msra.mxu0 0
    %159 = vmatprep.subr.bf16.mxu0 0
    %160 = vmatpush1.bf16.msra.mxu0 0
    %161 = vmatprep.subr.bf16.mxu0 0
    %162 = vmatpush1.bf16.msra.mxu0 0
    %163 = vmatprep.subr.bf16.mxu0 0
    %164 = vmatpush1.bf16.msra.mxu0 0
    %165 = vmatprep.subr.bf16.mxu0 0
    %166 = vmatpush1.bf16.msra.mxu0 0
    %167 = vmatprep.subr.bf16.mxu0 0
    %168 = vmatpush1.bf16.msra.mxu0 0
    %169 = vmatprep.subr.bf16.mxu0 0
    %170 = vmatpush1.bf16.msra.mxu0 0
    %171 = vmatprep.subr.bf16.mxu0 0
    %172 = vmatpush1.bf16.msra.mxu0 0
    %173 = vmatprep.subr.bf16.mxu0 0
    %174 = vmatpush1.bf16.msra.mxu0 0
    %175 = vmatprep.mubr.bf16.mxu0 0
    %176 = vmatmul.mubr.bf16.gmra.mrb[0].mxu0 %v88
    %v177 = vpop.f32.mrb[0].mxu0
    %v178 = vadd.f32 0.0, %v177
    %v179 = vpop.f32.mrb[0].mxu0
    %v180 = vpop.f32.mrb[0].mxu0
    %v181 = vadd.f32 0.0, %v180
    %v182 = vpop.f32.mrb[0].mxu0
    %183 = vdwg.mxu0
    %v188 = vunpack.c.l.b16 %v29
    %v189 = vunpack.c.l.b16 %v30
    %v190 = vunpack.c.l.b16 %v31
    %v191 = vunpack.c.l.b16 %v32
    %v192 = vpack.c.b16 %v189, %v188
    %v193 = vpack.c.b16 %v191, %v190
    %196 = vmatprep.subr.bf16.mxu0 0
    %197 = vmatpush1.bf16.msra.mxu0 %v192
    %198 = vmatprep.subr.bf16.mxu0 0
    %199 = vmatpush1.bf16.msra.mxu0 %v193
    %200 = vmatprep.subr.bf16.mxu0 0
    %201 = vmatpush1.bf16.msra.mxu0 0
    %202 = vmatprep.subr.bf16.mxu0 0
    %203 = vmatpush1.bf16.msra.mxu0 0
    %204 = vmatprep.subr.bf16.mxu0 0
    %205 = vmatpush1.bf16.msra.mxu0 0
    %206 = vmatprep.subr.bf16.mxu0 0
    %207 = vmatpush1.bf16.msra.mxu0 0
    %208 = vmatprep.subr.bf16.mxu0 0
    %209 = vmatpush1.bf16.msra.mxu0 0
    %210 = vmatprep.subr.bf16.mxu0 0
    %211 = vmatpush1.bf16.msra.mxu0 0
    %212 = vmatprep.subr.bf16.mxu0 0
    %213 = vmatpush1.bf16.msra.mxu0 0
    %214 = vmatprep.subr.bf16.mxu0 0
    %215 = vmatpush1.bf16.msra.mxu0 0
    %216 = vmatprep.subr.bf16.mxu0 0
    %217 = vmatpush1.bf16.msra.mxu0 0
    %218 = vmatprep.subr.bf16.mxu0 0
    %219 = vmatpush1.bf16.msra.mxu0 0
    %220 = vmatprep.subr.bf16.mxu0 0
    %221 = vmatpush1.bf16.msra.mxu0 0
    %222 = vmatprep.subr.bf16.mxu0 0
    %223 = vmatpush1.bf16.msra.mxu0 0
    %224 = vmatprep.subr.bf16.mxu0 0
    %225 = vmatpush1.bf16.msra.mxu0 0
    %226 = vmatprep.subr.bf16.mxu0 0
    %227 = vmatpush1.bf16.msra.mxu0 0
    %228 = vmatprep.mubr.bf16.mxu0 0
    %229 = vmatmul.mubr.bf16.gmra.mrb[0].mxu0 %v88
    %v230 = vpop.f32.mrb[0].mxu0
    %v231 = vadd.f32 0.0, %v230
    %v232 = vpop.f32.mrb[0].mxu0
    %v233 = vpop.f32.mrb[0].mxu0
    %v234 = vadd.f32 0.0, %v233
    %v235 = vpop.f32.mrb[0].mxu0
    %236 = vdwg.mxu0
    %v241 = vunpack.c.l.b16 %v33
    %v242 = vunpack.c.l.b16 %v34
    %v243 = vunpack.c.l.b16 %v35
    %v244 = vunpack.c.l.b16 %v36
    %v245 = vpack.c.b16 %v242, %v241
    %v246 = vpack.c.b16 %v244, %v243
    %249 = vmatprep.subr.bf16.mxu0 0
    %250 = vmatpush1.bf16.msra.mxu0 %v245
    %251 = vmatprep.subr.bf16.mxu0 0
    %252 = vmatpush1.bf16.msra.mxu0 %v246
    %253 = vmatprep.subr.bf16.mxu0 0
    %254 = vmatpush1.bf16.msra.mxu0 0
    %255 = vmatprep.subr.bf16.mxu0 0
    %256 = vmatpush1.bf16.msra.mxu0 0
    %257 = vmatprep.subr.bf16.mxu0 0
    %258 = vmatpush1.bf16.msra.mxu0 0
    %259 = vmatprep.subr.bf16.mxu0 0
    %260 = vmatpush1.bf16.msra.mxu0 0
    %261 = vmatprep.subr.bf16.mxu0 0
    %262 = vmatpush1.bf16.msra.mxu0 0
    %263 = vmatprep.subr.bf16.mxu0 0
    %264 = vmatpush1.bf16.msra.mxu0 0
    %265 = vmatprep.subr.bf16.mxu0 0
    %266 = vmatpush1.bf16.msra.mxu0 0
    %267 = vmatprep.subr.bf16.mxu0 0
    %268 = vmatpush1.bf16.msra.mxu0 0
    %269 = vmatprep.subr.bf16.mxu0 0
    %270 = vmatpush1.bf16.msra.mxu0 0
    %271 = vmatprep.subr.bf16.mxu0 0
    %272 = vmatpush1.bf16.msra.mxu0 0
    %273 = vmatprep.subr.bf16.mxu0 0
    %274 = vmatpush1.bf16.msra.mxu0 0
    %275 = vmatprep.subr.bf16.mxu0 0
    %276 = vmatpush1.bf16.msra.mxu0 0
    %277 = vmatprep.subr.bf16.mxu0 0
    %278 = vmatpush1.bf16.msra.mxu0 0
    %279 = vmatprep.subr.bf16.mxu0 0
    %280 = vmatpush1.bf16.msra.mxu0 0
    %281 = vmatprep.mubr.bf16.mxu0 0
    %282 = vmatmul.mubr.bf16.gmra.mrb[0].mxu0 %v88
    %v283 = vpop.f32.mrb[0].mxu0
    %v284 = vadd.f32 0.0, %v283
    %v285 = vpop.f32.mrb[0].mxu0
    %v286 = vpop.f32.mrb[0].mxu0
    %v287 = vadd.f32 0.0, %v286
    %v288 = vpop.f32.mrb[0].mxu0
    %289 = vdwg.mxu0
    %v294 = vunpack.c.l.b16 %v37
    %v295 = vunpack.c.l.b16 %v38
    %v296 = vunpack.c.l.b16 %v39
    %v297 = vunpack.c.l.b16 %v40
    %v298 = vpack.c.b16 %v295, %v294
    %v299 = vpack.c.b16 %v297, %v296
    %302 = vmatprep.subr.bf16.mxu0 0
    %303 = vmatpush1.bf16.msra.mxu0 %v298
    %304 = vmatprep.subr.bf16.mxu0 0
    %305 = vmatpush1.bf16.msra.mxu0 %v299
    %306 = vmatprep.subr.bf16.mxu0 0
    %307 = vmatpush1.bf16.msra.mxu0 0
    %308 = vmatprep.subr.bf16.mxu0 0
    %309 = vmatpush1.bf16.msra.mxu0 0
    %310 = vmatprep.subr.bf16.mxu0 0
    %311 = vmatpush1.bf16.msra.mxu0 0
    %312 = vmatprep.subr.bf16.mxu0 0
    %313 = vmatpush1.bf16.msra.mxu0 0
    %314 = vmatprep.subr.bf16.mxu0 0
    %315 = vmatpush1.bf16.msra.mxu0 0
    %316 = vmatprep.subr.bf16.mxu0 0
    %317 = vmatpush1.bf16.msra.mxu0 0
    %318 = vmatprep.subr.bf16.mxu0 0
    %319 = vmatpush1.bf16.msra.mxu0 0
    %320 = vmatprep.subr.bf16.mxu0 0
    %321 = vmatpush1.bf16.msra.mxu0 0
    %322 = vmatprep.subr.bf16.mxu0 0
    %323 = vmatpush1.bf16.msra.mxu0 0
    %324 = vmatprep.subr.bf16.mxu0 0
    %325 = vmatpush1.bf16.msra.mxu0 0
    %326 = vmatprep.subr.bf16.mxu0 0
    %327 = vmatpush1.bf16.msra.mxu0 0
    %328 = vmatprep.subr.bf16.mxu0 0
    %329 = vmatpush1.bf16.msra.mxu0 0
    %330 = vmatprep.subr.bf16.mxu0 0
    %331 = vmatpush1.bf16.msra.mxu0 0
    %332 = vmatprep.subr.bf16.mxu0 0
    %333 = vmatpush1.bf16.msra.mxu0 0
    %334 = vmatprep.mubr.bf16.mxu0 0
    %335 = vmatmul.mubr.bf16.gmra.mrb[0].mxu0 %v88
    %v336 = vpop.f32.mrb[0].mxu0
    %v337 = vadd.f32 0.0, %v336
    %v338 = vpop.f32.mrb[0].mxu0
    %v339 = vpop.f32.mrb[0].mxu0
    %v340 = vadd.f32 0.0, %v339
    %v341 = vpop.f32.mrb[0].mxu0
    %342 = vdwg.mxu0
    %v347 = vunpack.c.l.b16 %v41
    %v348 = vunpack.c.l.b16 %v42
    %v349 = vunpack.c.l.b16 %v43
    %v350 = vunpack.c.l.b16 %v44
    %v351 = vpack.c.b16 %v348, %v347
    %v352 = vpack.c.b16 %v350, %v349
    %355 = vmatprep.subr.bf16.mxu0 0
    %356 = vmatpush1.bf16.msra.mxu0 %v351
    %357 = vmatprep.subr.bf16.mxu0 0
    %358 = vmatpush1.bf16.msra.mxu0 %v352
    %359 = vmatprep.subr.bf16.mxu0 0
    %360 = vmatpush1.bf16.msra.mxu0 0
    %361 = vmatprep.subr.bf16.mxu0 0
    %362 = vmatpush1.bf16.msra.mxu0 0
    %363 = vmatprep.subr.bf16.mxu0 0
    %364 = vmatpush1.bf16.msra.mxu0 0
    %365 = vmatprep.subr.bf16.mxu0 0
    %366 = vmatpush1.bf16.msra.mxu0 0
    %367 = vmatprep.subr.bf16.mxu0 0
    %368 = vmatpush1.bf16.msra.mxu0 0
    %369 = vmatprep.subr.bf16.mxu0 0
    %370 = vmatpush1.bf16.msra.mxu0 0
    %371 = vmatprep.subr.bf16.mxu0 0
    %372 = vmatpush1.bf16.msra.mxu0 0
    %373 = vmatprep.subr.bf16.mxu0 0
    %374 = vmatpush1.bf16.msra.mxu0 0
    %375 = vmatprep.subr.bf16.mxu0 0
    %376 = vmatpush1.bf16.msra.mxu0 0
    %377 = vmatprep.subr.bf16.mxu0 0
    %378 = vmatpush1.bf16.msra.mxu0 0
    %379 = vmatprep.subr.bf16.mxu0 0
    %380 = vmatpush1.bf16.msra.mxu0 0
    %381 = vmatprep.subr.bf16.mxu0 0
    %382 = vmatpush1.bf16.msra.mxu0 0
    %383 = vmatprep.subr.bf16.mxu0 0
    %384 = vmatpush1.bf16.msra.mxu0 0
    %385 = vmatprep.subr.bf16.mxu0 0
    %386 = vmatpush1.bf16.msra.mxu0 0
    %387 = vmatprep.mubr.bf16.mxu0 0
    %388 = vmatmul.mubr.bf16.gmra.mrb[0].mxu0 %v88
    %v389 = vpop.f32.mrb[0].mxu0
    %v390 = vadd.f32 0.0, %v389
    %v391 = vpop.f32.mrb[0].mxu0
    %v392 = vpop.f32.mrb[0].mxu0
    %v393 = vadd.f32 0.0, %v392
    %v394 = vpop.f32.mrb[0].mxu0
    %395 = vdwg.mxu0
    %v400 = vunpack.c.l.b16 %v45
    %v401 = vunpack.c.l.b16 %v46
    %v402 = vunpack.c.l.b16 %v47
    %v403 = vunpack.c.l.b16 %v48
    %v404 = vpack.c.b16 %v401, %v400
    %v405 = vpack.c.b16 %v403, %v402
    %408 = vmatprep.subr.bf16.mxu0 0
    %409 = vmatpush1.bf16.msra.mxu0 %v404
    %410 = vmatprep.subr.bf16.mxu0 0
    %411 = vmatpush1.bf16.msra.mxu0 %v405
    %412 = vmatprep.subr.bf16.mxu0 0
    %413 = vmatpush1.bf16.msra.mxu0 0
    %414 = vmatprep.subr.bf16.mxu0 0
    %415 = vmatpush1.bf16.msra.mxu0 0
    %416 = vmatprep.subr.bf16.mxu0 0
    %417 = vmatpush1.bf16.msra.mxu0 0
    %418 = vmatprep.subr.bf16.mxu0 0
    %419 = vmatpush1.bf16.msra.mxu0 0
    %420 = vmatprep.subr.bf16.mxu0 0
    %421 = vmatpush1.bf16.msra.mxu0 0
    %422 = vmatprep.subr.bf16.mxu0 0
    %423 = vmatpush1.bf16.msra.mxu0 0
    %424 = vmatprep.subr.bf16.mxu0 0
    %425 = vmatpush1.bf16.msra.mxu0 0
    %426 = vmatprep.subr.bf16.mxu0 0
    %427 = vmatpush1.bf16.msra.mxu0 0
    %428 = vmatprep.subr.bf16.mxu0 0
    %429 = vmatpush1.bf16.msra.mxu0 0
    %430 = vmatprep.subr.bf16.mxu0 0
    %431 = vmatpush1.bf16.msra.mxu0 0
    %432 = vmatprep.subr.bf16.mxu0 0
    %433 = vmatpush1.bf16.msra.mxu0 0
    %434 = vmatprep.subr.bf16.mxu0 0
    %435 = vmatpush1.bf16.msra.mxu0 0
    %436 = vmatprep.subr.bf16.mxu0 0
    %437 = vmatpush1.bf16.msra.mxu0 0
    %438 = vmatprep.subr.bf16.mxu0 0
    %439 = vmatpush1.bf16.msra.mxu0 0
    %440 = vmatprep.mubr.bf16.mxu0 0
    %441 = vmatmul.mubr.bf16.gmra.mrb[0].mxu0 %v88
    %v442 = vpop.f32.mrb[0].mxu0
    %v443 = vadd.f32 0.0, %v442
    %v444 = vpop.f32.mrb[0].mxu0
    %v445 = vpop.f32.mrb[0].mxu0
    %v446 = vadd.f32 0.0, %v445
    %v447 = vpop.f32.mrb[0].mxu0
    %448 = vdwg.mxu0
    %v453 = vunpack.c.l.b16 %v49
    %v454 = vunpack.c.l.b16 %v50
    %v455 = vunpack.c.l.b16 %v51
    %v456 = vunpack.c.l.b16 %v52
    %v457 = vpack.c.b16 %v454, %v453
    %v458 = vpack.c.b16 %v456, %v455
    %461 = vmatprep.subr.bf16.mxu0 0
    %462 = vmatpush1.bf16.msra.mxu0 %v457
    %463 = vmatprep.subr.bf16.mxu0 0
    %464 = vmatpush1.bf16.msra.mxu0 %v458
    %465 = vmatprep.subr.bf16.mxu0 0
    %466 = vmatpush1.bf16.msra.mxu0 0
    %467 = vmatprep.subr.bf16.mxu0 0
    %468 = vmatpush1.bf16.msra.mxu0 0
    %469 = vmatprep.subr.bf16.mxu0 0
    %470 = vmatpush1.bf16.msra.mxu0 0
    %471 = vmatprep.subr.bf16.mxu0 0
    %472 = vmatpush1.bf16.msra.mxu0 0
    %473 = vmatprep.subr.bf16.mxu0 0
    %474 = vmatpush1.bf16.msra.mxu0 0
    %475 = vmatprep.subr.bf16.mxu0 0
    %476 = vmatpush1.bf16.msra.mxu0 0
    %477 = vmatprep.subr.bf16.mxu0 0
    %478 = vmatpush1.bf16.msra.mxu0 0
    %479 = vmatprep.subr.bf16.mxu0 0
    %480 = vmatpush1.bf16.msra.mxu0 0
    %481 = vmatprep.subr.bf16.mxu0 0
    %482 = vmatpush1.bf16.msra.mxu0 0
    %483 = vmatprep.subr.bf16.mxu0 0
    %484 = vmatpush1.bf16.msra.mxu0 0
    %485 = vmatprep.subr.bf16.mxu0 0
    %486 = vmatpush1.bf16.msra.mxu0 0
    %487 = vmatprep.subr.bf16.mxu0 0
    %488 = vmatpush1.bf16.msra.mxu0 0
    %489 = vmatprep.subr.bf16.mxu0 0
    %490 = vmatpush1.bf16.msra.mxu0 0
    %491 = vmatprep.subr.bf16.mxu0 0
    %492 = vmatpush1.bf16.msra.mxu0 0
    %493 = vmatprep.mubr.bf16.mxu0 0
    %494 = vmatmul.mubr.bf16.gmra.mrb[0].mxu0 %v88
    %v495 = vpop.f32.mrb[0].mxu0
    %v496 = vadd.f32 0.0, %v495
    %v497 = vpop.f32.mrb[0].mxu0
    %v498 = vpop.f32.mrb[0].mxu0
    %v499 = vadd.f32 0.0, %v498
    %v500 = vpop.f32.mrb[0].mxu0
    %501 = vdwg.mxu0
    %v506 = vunpack.c.l.b16 %v53
    %v507 = vunpack.c.l.b16 %v54
    %v508 = vunpack.c.l.b16 %v55
    %v509 = vunpack.c.l.b16 %v56
    %v510 = vpack.c.b16 %v507, %v506
    %v511 = vpack.c.b16 %v509, %v508
    %514 = vmatprep.subr.bf16.mxu0 0
    %515 = vmatpush1.bf16.msra.mxu0 %v510
    %516 = vmatprep.subr.bf16.mxu0 0
    %517 = vmatpush1.bf16.msra.mxu0 %v511
    %518 = vmatprep.subr.bf16.mxu0 0
    %519 = vmatpush1.bf16.msra.mxu0 0
    %520 = vmatprep.subr.bf16.mxu0 0
    %521 = vmatpush1.bf16.msra.mxu0 0
    %522 = vmatprep.subr.bf16.mxu0 0
    %523 = vmatpush1.bf16.msra.mxu0 0
    %524 = vmatprep.subr.bf16.mxu0 0
    %525 = vmatpush1.bf16.msra.mxu0 0
    %526 = vmatprep.subr.bf16.mxu0 0
    %527 = vmatpush1.bf16.msra.mxu0 0
    %528 = vmatprep.subr.bf16.mxu0 0
    %529 = vmatpush1.bf16.msra.mxu0 0
    %530 = vmatprep.subr.bf16.mxu0 0
    %531 = vmatpush1.bf16.msra.mxu0 0
    %532 = vmatprep.subr.bf16.mxu0 0
    %533 = vmatpush1.bf16.msra.mxu0 0
    %534 = vmatprep.subr.bf16.mxu0 0
    %535 = vmatpush1.bf16.msra.mxu0 0
    %536 = vmatprep.subr.bf16.mxu0 0
    %537 = vmatpush1.bf16.msra.mxu0 0
    %538 = vmatprep.subr.bf16.mxu0 0
    %539 = vmatpush1.bf16.msra.mxu0 0
    %540 = vmatprep.subr.bf16.mxu0 0
    %541 = vmatpush1.bf16.msra.mxu0 0
    %542 = vmatprep.subr.bf16.mxu0 0
    %543 = vmatpush1.bf16.msra.mxu0 0
    %544 = vmatprep.subr.bf16.mxu0 0
    %545 = vmatpush1.bf16.msra.mxu0 0
    %546 = vmatprep.mubr.bf16.mxu0 0
    %547 = vmatmul.mubr.bf16.gmra.mrb[0].mxu0 %v88
    %v548 = vpop.f32.mrb[0].mxu0
    %v549 = vadd.f32 0.0, %v548
    %v550 = vpop.f32.mrb[0].mxu0
    %v551 = vpop.f32.mrb[0].mxu0
    %v552 = vadd.f32 0.0, %v551
    %v553 = vpop.f32.mrb[0].mxu0
    %554 = vdwg.mxu0
    %v559 = vunpack.c.l.b16 %v57
    %v560 = vunpack.c.l.b16 %v58
    %v561 = vunpack.c.l.b16 %v59
    %v562 = vunpack.c.l.b16 %v60
    %v563 = vpack.c.b16 %v560, %v559
    %v564 = vpack.c.b16 %v562, %v561
    %567 = vmatprep.subr.bf16.mxu0 0
    %568 = vmatpush1.bf16.msra.mxu0 %v563
    %569 = vmatprep.subr.bf16.mxu0 0
    %570 = vmatpush1.bf16.msra.mxu0 %v564
    %571 = vmatprep.subr.bf16.mxu0 0
    %572 = vmatpush1.bf16.msra.mxu0 0
    %573 = vmatprep.subr.bf16.mxu0 0
    %574 = vmatpush1.bf16.msra.mxu0 0
    %575 = vmatprep.subr.bf16.mxu0 0
    %576 = vmatpush1.bf16.msra.mxu0 0
    %577 = vmatprep.subr.bf16.mxu0 0
    %578 = vmatpush1.bf16.msra.mxu0 0
    %579 = vmatprep.subr.bf16.mxu0 0
    %580 = vmatpush1.bf16.msra.mxu0 0
    %581 = vmatprep.subr.bf16.mxu0 0
    %582 = vmatpush1.bf16.msra.mxu0 0
    %583 = vmatprep.subr.bf16.mxu0 0
    %584 = vmatpush1.bf16.msra.mxu0 0
    %585 = vmatprep.subr.bf16.mxu0 0
    %586 = vmatpush1.bf16.msra.mxu0 0
    %587 = vmatprep.subr.bf16.mxu0 0
    %588 = vmatpush1.bf16.msra.mxu0 0
    %589 = vmatprep.subr.bf16.mxu0 0
    %590 = vmatpush1.bf16.msra.mxu0 0
    %591 = vmatprep.subr.bf16.mxu0 0
    %592 = vmatpush1.bf16.msra.mxu0 0
    %593 = vmatprep.subr.bf16.mxu0 0
    %594 = vmatpush1.bf16.msra.mxu0 0
    %595 = vmatprep.subr.bf16.mxu0 0
    %596 = vmatpush1.bf16.msra.mxu0 0
    %597 = vmatprep.subr.bf16.mxu0 0
    %598 = vmatpush1.bf16.msra.mxu0 0
    %599 = vmatprep.mubr.bf16.mxu0 0
    %600 = vmatmul.mubr.bf16.gmra.mrb[0].mxu0 %v88
    %v601 = vpop.f32.mrb[0].mxu0
    %v602 = vadd.f32 0.0, %v601
    %v603 = vpop.f32.mrb[0].mxu0
    %v604 = vpop.f32.mrb[0].mxu0
    %v605 = vadd.f32 0.0, %v604
    %v606 = vpop.f32.mrb[0].mxu0
    %607 = vdwg.mxu0
    %v612 = vunpack.c.l.b16 %v61
    %v613 = vunpack.c.l.b16 %v62
    %v614 = vunpack.c.l.b16 %v63
    %v615 = vunpack.c.l.b16 %v64
    %v616 = vpack.c.b16 %v613, %v612
    %v617 = vpack.c.b16 %v615, %v614
    %620 = vmatprep.subr.bf16.mxu0 0
    %621 = vmatpush1.bf16.msra.mxu0 %v616
    %622 = vmatprep.subr.bf16.mxu0 0
    %623 = vmatpush1.bf16.msra.mxu0 %v617
    %624 = vmatprep.subr.bf16.mxu0 0
    %625 = vmatpush1.bf16.msra.mxu0 0
    %626 = vmatprep.subr.bf16.mxu0 0
    %627 = vmatpush1.bf16.msra.mxu0 0
    %628 = vmatprep.subr.bf16.mxu0 0
    %629 = vmatpush1.bf16.msra.mxu0 0
    %630 = vmatprep.subr.bf16.mxu0 0
    %631 = vmatpush1.bf16.msra.mxu0 0
    %632 = vmatprep.subr.bf16.mxu0 0
    %633 = vmatpush1.bf16.msra.mxu0 0
    %634 = vmatprep.subr.bf16.mxu0 0
    %635 = vmatpush1.bf16.msra.mxu0 0
    %636 = vmatprep.subr.bf16.mxu0 0
    %637 = vmatpush1.bf16.msra.mxu0 0
    %638 = vmatprep.subr.bf16.mxu0 0
    %639 = vmatpush1.bf16.msra.mxu0 0
    %640 = vmatprep.subr.bf16.mxu0 0
    %641 = vmatpush1.bf16.msra.mxu0 0
    %642 = vmatprep.subr.bf16.mxu0 0
    %643 = vmatpush1.bf16.msra.mxu0 0
    %644 = vmatprep.subr.bf16.mxu0 0
    %645 = vmatpush1.bf16.msra.mxu0 0
    %646 = vmatprep.subr.bf16.mxu0 0
    %647 = vmatpush1.bf16.msra.mxu0 0
    %648 = vmatprep.subr.bf16.mxu0 0
    %649 = vmatpush1.bf16.msra.mxu0 0
    %650 = vmatprep.subr.bf16.mxu0 0
    %651 = vmatpush1.bf16.msra.mxu0 0
    %652 = vmatprep.mubr.bf16.mxu0 0
    %653 = vmatmul.mubr.bf16.gmra.mrb[0].mxu0 %v88
    %v654 = vpop.f32.mrb[0].mxu0
    %v655 = vadd.f32 0.0, %v654
    %v656 = vpop.f32.mrb[0].mxu0
    %v657 = vpop.f32.mrb[0].mxu0
    %v658 = vadd.f32 0.0, %v657
    %v659 = vpop.f32.mrb[0].mxu0
    %660 = vdwg.mxu0
    %v665 = vunpack.c.l.b16 %v65
    %v666 = vunpack.c.l.b16 %v66
    %v667 = vunpack.c.l.b16 %v67
    %v668 = vunpack.c.l.b16 %v68
    %v669 = vpack.c.b16 %v666, %v665
    %v670 = vpack.c.b16 %v668, %v667
    %673 = vmatprep.subr.bf16.mxu0 0
    %674 = vmatpush1.bf16.msra.mxu0 %v669
    %675 = vmatprep.subr.bf16.mxu0 0
    %676 = vmatpush1.bf16.msra.mxu0 %v670
    %677 = vmatprep.subr.bf16.mxu0 0
    %678 = vmatpush1.bf16.msra.mxu0 0
    %679 = vmatprep.subr.bf16.mxu0 0
    %680 = vmatpush1.bf16.msra.mxu0 0
    %681 = vmatprep.subr.bf16.mxu0 0
    %682 = vmatpush1.bf16.msra.mxu0 0
    %683 = vmatprep.subr.bf16.mxu0 0
    %684 = vmatpush1.bf16.msra.mxu0 0
    %685 = vmatprep.subr.bf16.mxu0 0
    %686 = vmatpush1.bf16.msra.mxu0 0
    %687 = vmatprep.subr.bf16.mxu0 0
    %688 = vmatpush1.bf16.msra.mxu0 0
    %689 = vmatprep.subr.bf16.mxu0 0
    %690 = vmatpush1.bf16.msra.mxu0 0
    %691 = vmatprep.subr.bf16.mxu0 0
    %692 = vmatpush1.bf16.msra.mxu0 0
    %693 = vmatprep.subr.bf16.mxu0 0
    %694 = vmatpush1.bf16.msra.mxu0 0
    %695 = vmatprep.subr.bf16.mxu0 0
    %696 = vmatpush1.bf16.msra.mxu0 0
    %697 = vmatprep.subr.bf16.mxu0 0
    %698 = vmatpush1.bf16.msra.mxu0 0
    %699 = vmatprep.subr.bf16.mxu0 0
    %700 = vmatpush1.bf16.msra.mxu0 0
    %701 = vmatprep.subr.bf16.mxu0 0
    %702 = vmatpush1.bf16.msra.mxu0 0
    %703 = vmatprep.subr.bf16.mxu0 0
    %704 = vmatpush1.bf16.msra.mxu0 0
    %705 = vmatprep.mubr.bf16.mxu0 0
    %706 = vmatmul.mubr.bf16.gmra.mrb[0].mxu0 %v88
    %v707 = vpop.f32.mrb[0].mxu0
    %v708 = vadd.f32 0.0, %v707
    %v709 = vpop.f32.mrb[0].mxu0
    %v710 = vpop.f32.mrb[0].mxu0
    %v711 = vadd.f32 0.0, %v710
    %v712 = vpop.f32.mrb[0].mxu0
    %713 = vdwg.mxu0
    %v714 = vpack.c.bf16 %v125, %v125
    %v715 = vpack.c.bf16 %v128, %v128
    %v716 = vpack.c.bf16 %v178, %v178
    %v717 = vpack.c.bf16 %v181, %v181
    %v718 = vpack.c.bf16 %v231, %v231
    %v719 = vpack.c.bf16 %v234, %v234
    %v720 = vpack.c.bf16 %v284, %v284
    %v721 = vpack.c.bf16 %v287, %v287
    %v722 = vpack.c.bf16 %v337, %v337
    %v723 = vpack.c.bf16 %v340, %v340
    %v724 = vpack.c.bf16 %v390, %v390
    %v725 = vpack.c.bf16 %v393, %v393
    %v726 = vpack.c.bf16 %v443, %v443
    %v727 = vpack.c.bf16 %v446, %v446
    %v728 = vpack.c.bf16 %v496, %v496
    %v729 = vpack.c.bf16 %v499, %v499
    %v730 = vpack.c.bf16 %v549, %v549
    %v731 = vpack.c.bf16 %v552, %v552
    %v732 = vpack.c.bf16 %v602, %v602
    %v733 = vpack.c.bf16 %v605, %v605
    %v734 = vpack.c.bf16 %v655, %v655
    %v735 = vpack.c.bf16 %v658, %v658
    %v736 = vpack.c.bf16 %v708, %v708
    %v737 = vpack.c.bf16 %v711, %v711
    %vm738 = vcmask 64512
    %v740 = vsel %vm738, %v714, 0
    %v743 = vsel %vm738, %v722, 0
    %745 = vmatprep.subr.bf16.mxu0 0
    %746 = vmatpush1.bf16.xpose.msra.mxu0 %v743
    %747 = vmatprep.subr.bf16.mxu0 0
    %748 = vmatpush1.bf16.xpose.msra.mxu0 0
    %749 = vmatprep.subr.bf16.mxu0 0
    %750 = vmatpush1.bf16.xpose.msra.mxu0 0
    %751 = vmatprep.subr.bf16.mxu0 0
    %752 = vmatpush1.bf16.xpose.msra.mxu0 0
    %753 = vmatprep.subr.bf16.mxu0 0
    %754 = vmatpush1.bf16.xpose.msra.mxu0 0
    %755 = vmatprep.subr.bf16.mxu0 0
    %756 = vmatpush1.bf16.xpose.msra.mxu0 0
    %757 = vmatprep.subr.bf16.mxu0 0
    %758 = vmatpush1.bf16.xpose.msra.mxu0 0
    %759 = vmatprep.subr.bf16.mxu0 0
    %760 = vmatpush1.bf16.xpose.msra.mxu0 0
    %761 = vmatprep.subr.bf16.mxu0 0
    %762 = vmatpush1.bf16.xpose.msra.mxu0 0
    %763 = vmatprep.subr.bf16.mxu0 0
    %764 = vmatpush1.bf16.xpose.msra.mxu0 0
    %765 = vmatprep.subr.bf16.mxu0 0
    %766 = vmatpush1.bf16.xpose.msra.mxu0 0
    %767 = vmatprep.subr.bf16.mxu0 0
    %768 = vmatpush1.bf16.xpose.msra.mxu0 0
    %769 = vmatprep.subr.bf16.mxu0 0
    %770 = vmatpush1.bf16.xpose.msra.mxu0 0
    %771 = vmatprep.subr.bf16.mxu0 0
    %772 = vmatpush1.bf16.xpose.msra.mxu0 0
    %773 = vmatprep.subr.bf16.mxu0 0
    %774 = vmatpush1.bf16.xpose.msra.mxu0 0
    %775 = vmatprep.subr.bf16.mxu0 0
    %776 = vmatpush1.bf16.xpose.msra.mxu0 0
    %777 = vmatprep.mubr.bf16.mxu0 0
    %778 = vmatmul.mubr.bf16.gmra.mrb[0].mxu0 %v740
    %v779 = vpop.f32.mrb[0].mxu0
    %v780 = vadd.f32 0.0, %v779
    %v781 = vpop.f32.mrb[0].mxu0
    %v782 = vpop.f32.mrb[0].mxu0
    %v783 = vpop.f32.mrb[0].mxu0
    %784 = vdwg.mxu0
    %v786 = vsel %vm738, %v715, 0
    %v789 = vsel %vm738, %v723, 0
    %791 = vmatprep.subr.bf16.mxu0 0
    %792 = vmatpush1.bf16.xpose.msra.mxu0 %v789
    %793 = vmatprep.subr.bf16.mxu0 0
    %794 = vmatpush1.bf16.xpose.msra.mxu0 0
    %795 = vmatprep.subr.bf16.mxu0 0
    %796 = vmatpush1.bf16.xpose.msra.mxu0 0
    %797 = vmatprep.subr.bf16.mxu0 0
    %798 = vmatpush1.bf16.xpose.msra.mxu0 0
    %799 = vmatprep.subr.bf16.mxu0 0
    %800 = vmatpush1.bf16.xpose.msra.mxu0 0
    %801 = vmatprep.subr.bf16.mxu0 0
    %802 = vmatpush1.bf16.xpose.msra.mxu0 0
    %803 = vmatprep.subr.bf16.mxu0 0
    %804 = vmatpush1.bf16.xpose.msra.mxu0 0
    %805 = vmatprep.subr.bf16.mxu0 0
    %806 = vmatpush1.bf16.xpose.msra.mxu0 0
    %807 = vmatprep.subr.bf16.mxu0 0
    %808 = vmatpush1.bf16.xpose.msra.mxu0 0
    %809 = vmatprep.subr.bf16.mxu0 0
    %810 = vmatpush1.bf16.xpose.msra.mxu0 0
    %811 = vmatprep.subr.bf16.mxu0 0
    %812 = vmatpush1.bf16.xpose.msra.mxu0 0
    %813 = vmatprep.subr.bf16.mxu0 0
    %814 = vmatpush1.bf16.xpose.msra.mxu0 0
    %815 = vmatprep.subr.bf16.mxu0 0
    %816 = vmatpush1.bf16.xpose.msra.mxu0 0
    %817 = vmatprep.subr.bf16.mxu0 0
    %818 = vmatpush1.bf16.xpose.msra.mxu0 0
    %819 = vmatprep.subr.bf16.mxu0 0
    %820 = vmatpush1.bf16.xpose.msra.mxu0 0
    %821 = vmatprep.subr.bf16.mxu0 0
    %822 = vmatpush1.bf16.xpose.msra.mxu0 0
    %823 = vmatprep.mubr.bf16.mxu0 0
    %824 = vmatmul.mubr.bf16.gmra.mrb[0].mxu0 %v786
    %v825 = vpop.f32.mrb[0].mxu0
    %v826 = vadd.f32 0.0, %v825
    %v827 = vpop.f32.mrb[0].mxu0
    %v828 = vpop.f32.mrb[0].mxu0
    %v829 = vpop.f32.mrb[0].mxu0
    %830 = vdwg.mxu0
    %v832 = vsel %vm738, %v716, 0
    %v835 = vsel %vm738, %v724, 0
    %837 = vmatprep.subr.bf16.mxu0 0
    %838 = vmatpush1.bf16.xpose.msra.mxu0 %v835
    %839 = vmatprep.subr.bf16.mxu0 0
    %840 = vmatpush1.bf16.xpose.msra.mxu0 0
    %841 = vmatprep.subr.bf16.mxu0 0
    %842 = vmatpush1.bf16.xpose.msra.mxu0 0
    %843 = vmatprep.subr.bf16.mxu0 0
    %844 = vmatpush1.bf16.xpose.msra.mxu0 0
    %845 = vmatprep.subr.bf16.mxu0 0
    %846 = vmatpush1.bf16.xpose.msra.mxu0 0
    %847 = vmatprep.subr.bf16.mxu0 0
    %848 = vmatpush1.bf16.xpose.msra.mxu0 0
    %849 = vmatprep.subr.bf16.mxu0 0
    %850 = vmatpush1.bf16.xpose.msra.mxu0 0
    %851 = vmatprep.subr.bf16.mxu0 0
    %852 = vmatpush1.bf16.xpose.msra.mxu0 0
    %853 = vmatprep.subr.bf16.mxu0 0
    %854 = vmatpush1.bf16.xpose.msra.mxu0 0
    %855 = vmatprep.subr.bf16.mxu0 0
    %856 = vmatpush1.bf16.xpose.msra.mxu0 0
    %857 = vmatprep.subr.bf16.mxu0 0
    %858 = vmatpush1.bf16.xpose.msra.mxu0 0
    %859 = vmatprep.subr.bf16.mxu0 0
    %860 = vmatpush1.bf16.xpose.msra.mxu0 0
    %861 = vmatprep.subr.bf16.mxu0 0
    %862 = vmatpush1.bf16.xpose.msra.mxu0 0
    %863 = vmatprep.subr.bf16.mxu0 0
    %864 = vmatpush1.bf16.xpose.msra.mxu0 0
    %865 = vmatprep.subr.bf16.mxu0 0
    %866 = vmatpush1.bf16.xpose.msra.mxu0 0
    %867 = vmatprep.subr.bf16.mxu0 0
    %868 = vmatpush1.bf16.xpose.msra.mxu0 0
    %869 = vmatprep.mubr.bf16.mxu0 0
    %870 = vmatmul.mubr.bf16.gmra.mrb[0].mxu0 %v832
    %v871 = vpop.f32.mrb[0].mxu0
    %v872 = vadd.f32 0.0, %v871
    %v873 = vpop.f32.mrb[0].mxu0
    %v874 = vpop.f32.mrb[0].mxu0
    %v875 = vpop.f32.mrb[0].mxu0
    %876 = vdwg.mxu0
    %v878 = vsel %vm738, %v717, 0
    %v881 = vsel %vm738, %v725, 0
    %883 = vmatprep.subr.bf16.mxu0 0
    %884 = vmatpush1.bf16.xpose.msra.mxu0 %v881
    %885 = vmatprep.subr.bf16.mxu0 0
    %886 = vmatpush1.bf16.xpose.msra.mxu0 0
    %887 = vmatprep.subr.bf16.mxu0 0
    %888 = vmatpush1.bf16.xpose.msra.mxu0 0
    %889 = vmatprep.subr.bf16.mxu0 0
    %890 = vmatpush1.bf16.xpose.msra.mxu0 0
    %891 = vmatprep.subr.bf16.mxu0 0
    %892 = vmatpush1.bf16.xpose.msra.mxu0 0
    %893 = vmatprep.subr.bf16.mxu0 0
    %894 = vmatpush1.bf16.xpose.msra.mxu0 0
    %895 = vmatprep.subr.bf16.mxu0 0
    %896 = vmatpush1.bf16.xpose.msra.mxu0 0
    %897 = vmatprep.subr.bf16.mxu0 0
    %898 = vmatpush1.bf16.xpose.msra.mxu0 0
    %899 = vmatprep.subr.bf16.mxu0 0
    %900 = vmatpush1.bf16.xpose.msra.mxu0 0
    %901 = vmatprep.subr.bf16.mxu0 0
    %902 = vmatpush1.bf16.xpose.msra.mxu0 0
    %903 = vmatprep.subr.bf16.mxu0 0
    %904 = vmatpush1.bf16.xpose.msra.mxu0 0
    %905 = vmatprep.subr.bf16.mxu0 0
    %906 = vmatpush1.bf16.xpose.msra.mxu0 0
    %907 = vmatprep.subr.bf16.mxu0 0
    %908 = vmatpush1.bf16.xpose.msra.mxu0 0
    %909 = vmatprep.subr.bf16.mxu0 0
    %910 = vmatpush1.bf16.xpose.msra.mxu0 0
    %911 = vmatprep.subr.bf16.mxu0 0
    %912 = vmatpush1.bf16.xpose.msra.mxu0 0
    %913 = vmatprep.subr.bf16.mxu0 0
    %914 = vmatpush1.bf16.xpose.msra.mxu0 0
    %915 = vmatprep.mubr.bf16.mxu0 0
    %916 = vmatmul.mubr.bf16.gmra.mrb[0].mxu0 %v878
    %v917 = vpop.f32.mrb[0].mxu0
    %v918 = vadd.f32 0.0, %v917
    %v919 = vpop.f32.mrb[0].mxu0
    %v920 = vpop.f32.mrb[0].mxu0
    %v921 = vpop.f32.mrb[0].mxu0
    %922 = vdwg.mxu0
    %v924 = vsel %vm738, %v718, 0
    %v927 = vsel %vm738, %v726, 0
    %929 = vmatprep.subr.bf16.mxu0 0
    %930 = vmatpush1.bf16.xpose.msra.mxu0 %v927
    %931 = vmatprep.subr.bf16.mxu0 0
    %932 = vmatpush1.bf16.xpose.msra.mxu0 0
    %933 = vmatprep.subr.bf16.mxu0 0
    %934 = vmatpush1.bf16.xpose.msra.mxu0 0
    %935 = vmatprep.subr.bf16.mxu0 0
    %936 = vmatpush1.bf16.xpose.msra.mxu0 0
    %937 = vmatprep.subr.bf16.mxu0 0
    %938 = vmatpush1.bf16.xpose.msra.mxu0 0
    %939 = vmatprep.subr.bf16.mxu0 0
    %940 = vmatpush1.bf16.xpose.msra.mxu0 0
    %941 = vmatprep.subr.bf16.mxu0 0
    %942 = vmatpush1.bf16.xpose.msra.mxu0 0
    %943 = vmatprep.subr.bf16.mxu0 0
    %944 = vmatpush1.bf16.xpose.msra.mxu0 0
    %945 = vmatprep.subr.bf16.mxu0 0
    %946 = vmatpush1.bf16.xpose.msra.mxu0 0
    %947 = vmatprep.subr.bf16.mxu0 0
    %948 = vmatpush1.bf16.xpose.msra.mxu0 0
    %949 = vmatprep.subr.bf16.mxu0 0
    %950 = vmatpush1.bf16.xpose.msra.mxu0 0
    %951 = vmatprep.subr.bf16.mxu0 0
    %952 = vmatpush1.bf16.xpose.msra.mxu0 0
    %953 = vmatprep.subr.bf16.mxu0 0
    %954 = vmatpush1.bf16.xpose.msra.mxu0 0
    %955 = vmatprep.subr.bf16.mxu0 0
    %956 = vmatpush1.bf16.xpose.msra.mxu0 0
    %957 = vmatprep.subr.bf16.mxu0 0
    %958 = vmatpush1.bf16.xpose.msra.mxu0 0
    %959 = vmatprep.subr.bf16.mxu0 0
    %960 = vmatpush1.bf16.xpose.msra.mxu0 0
    %961 = vmatprep.mubr.bf16.mxu0 0
    %962 = vmatmul.mubr.bf16.gmra.mrb[0].mxu0 %v924
    %v963 = vpop.f32.mrb[0].mxu0
    %v964 = vadd.f32 0.0, %v963
    %v965 = vpop.f32.mrb[0].mxu0
    %v966 = vpop.f32.mrb[0].mxu0
    %v967 = vpop.f32.mrb[0].mxu0
    %968 = vdwg.mxu0
    %v970 = vsel %vm738, %v719, 0
    %v973 = vsel %vm738, %v727, 0
    %975 = vmatprep.subr.bf16.mxu0 0
    %976 = vmatpush1.bf16.xpose.msra.mxu0 %v973
    %977 = vmatprep.subr.bf16.mxu0 0
    %978 = vmatpush1.bf16.xpose.msra.mxu0 0
    %979 = vmatprep.subr.bf16.mxu0 0
    %980 = vmatpush1.bf16.xpose.msra.mxu0 0
    %981 = vmatprep.subr.bf16.mxu0 0
    %982 = vmatpush1.bf16.xpose.msra.mxu0 0
    %983 = vmatprep.subr.bf16.mxu0 0
    %984 = vmatpush1.bf16.xpose.msra.mxu0 0
    %985 = vmatprep.subr.bf16.mxu0 0
    %986 = vmatpush1.bf16.xpose.msra.mxu0 0
    %987 = vmatprep.subr.bf16.mxu0 0
    %988 = vmatpush1.bf16.xpose.msra.mxu0 0
    %989 = vmatprep.subr.bf16.mxu0 0
    %990 = vmatpush1.bf16.xpose.msra.mxu0 0
    %991 = vmatprep.subr.bf16.mxu0 0
    %992 = vmatpush1.bf16.xpose.msra.mxu0 0
    %993 = vmatprep.subr.bf16.mxu0 0
    %994 = vmatpush1.bf16.xpose.msra.mxu0 0
    %995 = vmatprep.subr.bf16.mxu0 0
    %996 = vmatpush1.bf16.xpose.msra.mxu0 0
    %997 = vmatprep.subr.bf16.mxu0 0
    %998 = vmatpush1.bf16.xpose.msra.mxu0 0
    %999 = vmatprep.subr.bf16.mxu0 0
    %1000 = vmatpush1.bf16.xpose.msra.mxu0 0
    %1001 = vmatprep.subr.bf16.mxu0 0
    %1002 = vmatpush1.bf16.xpose.msra.mxu0 0
    %1003 = vmatprep.subr.bf16.mxu0 0
    %1004 = vmatpush1.bf16.xpose.msra.mxu0 0
    %1005 = vmatprep.subr.bf16.mxu0 0
    %1006 = vmatpush1.bf16.xpose.msra.mxu0 0
    %1007 = vmatprep.mubr.bf16.mxu0 0
    %1008 = vmatmul.mubr.bf16.gmra.mrb[0].mxu0 %v970
    %v1009 = vpop.f32.mrb[0].mxu0
    %v1010 = vadd.f32 0.0, %v1009
    %v1011 = vpop.f32.mrb[0].mxu0
    %v1012 = vpop.f32.mrb[0].mxu0
    %v1013 = vpop.f32.mrb[0].mxu0
    %1014 = vdwg.mxu0
    %v1016 = vsel %vm738, %v720, 0
    %v1019 = vsel %vm738, %v728, 0
    %1021 = vmatprep.subr.bf16.mxu0 0
    %1022 = vmatpush1.bf16.xpose.msra.mxu0 %v1019
    %1023 = vmatprep.subr.bf16.mxu0 0
    %1024 = vmatpush1.bf16.xpose.msra.mxu0 0
    %1025 = vmatprep.subr.bf16.mxu0 0
    %1026 = vmatpush1.bf16.xpose.msra.mxu0 0
    %1027 = vmatprep.subr.bf16.mxu0 0
    %1028 = vmatpush1.bf16.xpose.msra.mxu0 0
    %1029 = vmatprep.subr.bf16.mxu0 0
    %1030 = vmatpush1.bf16.xpose.msra.mxu0 0
    %1031 = vmatprep.subr.bf16.mxu0 0
    %1032 = vmatpush1.bf16.xpose.msra.mxu0 0
    %1033 = vmatprep.subr.bf16.mxu0 0
    %1034 = vmatpush1.bf16.xpose.msra.mxu0 0
    %1035 = vmatprep.subr.bf16.mxu0 0
    %1036 = vmatpush1.bf16.xpose.msra.mxu0 0
    %1037 = vmatprep.subr.bf16.mxu0 0
    %1038 = vmatpush1.bf16.xpose.msra.mxu0 0
    %1039 = vmatprep.subr.bf16.mxu0 0
    %1040 = vmatpush1.bf16.xpose.msra.mxu0 0
    %1041 = vmatprep.subr.bf16.mxu0 0
    %1042 = vmatpush1.bf16.xpose.msra.mxu0 0
    %1043 = vmatprep.subr.bf16.mxu0 0
    %1044 = vmatpush1.bf16.xpose.msra.mxu0 0
    %1045 = vmatprep.subr.bf16.mxu0 0
    %1046 = vmatpush1.bf16.xpose.msra.mxu0 0
    %1047 = vmatprep.subr.bf16.mxu0 0
    %1048 = vmatpush1.bf16.xpose.msra.mxu0 0
    %1049 = vmatprep.subr.bf16.mxu0 0
    %1050 = vmatpush1.bf16.xpose.msra.mxu0 0
    %1051 = vmatprep.subr.bf16.mxu0 0
    %1052 = vmatpush1.bf16.xpose.msra.mxu0 0
    %1053 = vmatprep.mubr.bf16.mxu0 0
    %1054 = vmatmul.mubr.bf16.gmra.mrb[0].mxu0 %v1016
    %v1055 = vpop.f32.mrb[0].mxu0
    %v1056 = vadd.f32 0.0, %v1055
    %v1057 = vpop.f32.mrb[0].mxu0
    %v1058 = vpop.f32.mrb[0].mxu0
    %v1059 = vpop.f32.mrb[0].mxu0
    %1060 = vdwg.mxu0
    %v1062 = vsel %vm738, %v721, 0
    %v1065 = vsel %vm738, %v729, 0
    %1067 = vmatprep.subr.bf16.mxu0 0
    %1068 = vmatpush1.bf16.xpose.msra.mxu0 %v1065
    %1069 = vmatprep.subr.bf16.mxu0 0
    %1070 = vmatpush1.bf16.xpose.msra.mxu0 0
    %1071 = vmatprep.subr.bf16.mxu0 0
    %1072 = vmatpush1.bf16.xpose.msra.mxu0 0
    %1073 = vmatprep.subr.bf16.mxu0 0
    %1074 = vmatpush1.bf16.xpose.msra.mxu0 0
    %1075 = vmatprep.subr.bf16.mxu0 0
    %1076 = vmatpush1.bf16.xpose.msra.mxu0 0
    %1077 = vmatprep.subr.bf16.mxu0 0
    %1078 = vmatpush1.bf16.xpose.msra.mxu0 0
    %1079 = vmatprep.subr.bf16.mxu0 0
    %1080 = vmatpush1.bf16.xpose.msra.mxu0 0
    %1081 = vmatprep.subr.bf16.mxu0 0
    %1082 = vmatpush1.bf16.xpose.msra.mxu0 0
    %1083 = vmatprep.subr.bf16.mxu0 0
    %1084 = vmatpush1.bf16.xpose.msra.mxu0 0
    %1085 = vmatprep.subr.bf16.mxu0 0
    %1086 = vmatpush1.bf16.xpose.msra.mxu0 0
    %1087 = vmatprep.subr.bf16.mxu0 0
    %1088 = vmatpush1.bf16.xpose.msra.mxu0 0
    %1089 = vmatprep.subr.bf16.mxu0 0
    %1090 = vmatpush1.bf16.xpose.msra.mxu0 0
    %1091 = vmatprep.subr.bf16.mxu0 0
    %1092 = vmatpush1.bf16.xpose.msra.mxu0 0
    %1093 = vmatprep.subr.bf16.mxu0 0
    %1094 = vmatpush1.bf16.xpose.msra.mxu0 0
    %1095 = vmatprep.subr.bf16.mxu0 0
    %1096 = vmatpush1.bf16.xpose.msra.mxu0 0
    %1097 = vmatprep.subr.bf16.mxu0 0
    %1098 = vmatpush1.bf16.xpose.msra.mxu0 0
    %1099 = vmatprep.mubr.bf16.mxu0 0
    %1100 = vmatmul.mubr.bf16.gmra.mrb[0].mxu0 %v1062
    %v1101 = vpop.f32.mrb[0].mxu0
    %v1102 = vadd.f32 0.0, %v1101
    %v1103 = vpop.f32.mrb[0].mxu0
    %v1104 = vpop.f32.mrb[0].mxu0
    %v1105 = vpop.f32.mrb[0].mxu0
    %1106 = vdwg.mxu0
    %v1107 = vlaneseq
    %v1108 = vshrl.u32 %v1107, 7
    %v1109 = vlaneseq
    %v1110 = vand.u32 %v1109, 127
    %vm1111 = vcmp.le.s32.totalorder %v1110, %v1108
    %v1112 = vsel %vm1111, %v780, -1e+30
    %v1113 = vsel %vm1111, %v826, -1e+30
    %v1114 = vsel %vm1111, %v872, -1e+30
    %v1115 = vsel %vm1111, %v918, -1e+30
    %v1116 = vsel %vm1111, %v964, -1e+30
    %v1117 = vsel %vm1111, %v1010, -1e+30
    %v1118 = vsel %vm1111, %v1056, -1e+30
    %v1119 = vsel %vm1111, %v1102, -1e+30
    %v1120 = vsel %vm738, %v1112, -inf
    %1121 = vmax.xlane.f32.xlu0 %v1120
    %v1122 = vpop.xlane.xlu0 %1121
    %v1123 = vsel %vm738, %v1113, -inf
    %1124 = vmax.xlane.f32.xlu0 %v1123
    %v1125 = vpop.xlane.xlu0 %1124
    %v1126 = vsel %vm738, %v1114, -inf
    %1127 = vmax.xlane.f32.xlu0 %v1126
    %v1128 = vpop.xlane.xlu0 %1127
    %v1129 = vsel %vm738, %v1115, -inf
    %1130 = vmax.xlane.f32.xlu0 %v1129
    %v1131 = vpop.xlane.xlu0 %1130
    %v1132 = vsel %vm738, %v1116, -inf
    %1133 = vmax.xlane.f32.xlu0 %v1132
    %v1134 = vpop.xlane.xlu0 %1133
    %v1135 = vsel %vm738, %v1117, -inf
    %1136 = vmax.xlane.f32.xlu0 %v1135
    %v1137 = vpop.xlane.xlu0 %1136
    %v1138 = vsel %vm738, %v1118, -inf
    %1139 = vmax.xlane.f32.xlu0 %v1138
    %v1140 = vpop.xlane.xlu0 %1139
    %v1141 = vsel %vm738, %v1119, -inf
    %1142 = vmax.xlane.f32.xlu0 %v1141
    %v1143 = vpop.xlane.xlu0 %1142
    %v1144 = vsub.f32 %v1112, %v1122
    %v1145 = vsub.f32 %v1113, %v1125
    %v1146 = vsub.f32 %v1114, %v1128
    %v1147 = vsub.f32 %v1115, %v1131
    %v1148 = vsub.f32 %v1116, %v1134
    %v1149 = vsub.f32 %v1117, %v1137
    %v1150 = vsub.f32 %v1118, %v1140
    %v1151 = vsub.f32 %v1119, %v1143
    %v1152 = vmul.f32 %v1144, 1.442695
    %v1153 = vpow.pop %v1152
    %v1154 = vmul.f32 %v1145, 1.442695
    %v1155 = vpow.pop %v1154
    %v1156 = vmul.f32 %v1146, 1.442695
    %v1157 = vpow.pop %v1156
    %v1158 = vmul.f32 %v1147, 1.442695
    %v1159 = vpow.pop %v1158
    %v1160 = vmul.f32 %v1148, 1.442695
    %v1161 = vpow.pop %v1160
    %v1162 = vmul.f32 %v1149, 1.442695
    %v1163 = vpow.pop %v1162
    %v1164 = vmul.f32 %v1150, 1.442695
    %v1165 = vpow.pop %v1164
    %v1166 = vmul.f32 %v1151, 1.442695
    %v1167 = vpow.pop %v1166
    %v1168 = vsel %vm738, %v1153, 0.0
    %1169 = vadd.xlane.f32.xlu0 %v1168
    %v1170 = vpop.xlane.xlu0 %1169
    %v1171 = vsel %vm738, %v1155, 0.0
    %1172 = vadd.xlane.f32.xlu0 %v1171
    %v1173 = vpop.xlane.xlu0 %1172
    %v1174 = vsel %vm738, %v1157, 0.0
    %1175 = vadd.xlane.f32.xlu0 %v1174
    %v1176 = vpop.xlane.xlu0 %1175
    %v1177 = vsel %vm738, %v1159, 0.0
    %1178 = vadd.xlane.f32.xlu0 %v1177
    %v1179 = vpop.xlane.xlu0 %1178
    %v1180 = vsel %vm738, %v1161, 0.0
    %1181 = vadd.xlane.f32.xlu0 %v1180
    %v1182 = vpop.xlane.xlu0 %1181
    %v1183 = vsel %vm738, %v1163, 0.0
    %1184 = vadd.xlane.f32.xlu0 %v1183
    %v1185 = vpop.xlane.xlu0 %1184
    %v1186 = vsel %vm738, %v1165, 0.0
    %1187 = vadd.xlane.f32.xlu0 %v1186
    %v1188 = vpop.xlane.xlu0 %1187
    %v1189 = vsel %vm738, %v1167, 0.0
    %1190 = vadd.xlane.f32.xlu0 %v1189
    %v1191 = vpop.xlane.xlu0 %1190
    %v1192 = vpack.c.bf16 %v1153, %v1153
    %v1193 = vpack.c.bf16 %v1155, %v1155
    %v1194 = vpack.c.bf16 %v1157, %v1157
    %v1195 = vpack.c.bf16 %v1159, %v1159
    %v1196 = vpack.c.bf16 %v1161, %v1161
    %v1197 = vpack.c.bf16 %v1163, %v1163
    %v1198 = vpack.c.bf16 %v1165, %v1165
    %v1199 = vpack.c.bf16 %v1167, %v1167
    %v1201 = vsel %vm738, %v1192, 0
    %vm1203 = vcmask 1043456
    %v1205 = vsel %vm1203, %v730, 0
    %1207 = vmatprep.subr.bf16.mxu0 0
    %1208 = vmatpush1.bf16.msra.mxu0 %v1205
    %1209 = vmatprep.subr.bf16.mxu0 0
    %1210 = vmatpush1.bf16.msra.mxu0 0
    %1211 = vmatprep.subr.bf16.mxu0 0
    %1212 = vmatpush1.bf16.msra.mxu0 0
    %1213 = vmatprep.subr.bf16.mxu0 0
    %1214 = vmatpush1.bf16.msra.mxu0 0
    %1215 = vmatprep.subr.bf16.mxu0 0
    %1216 = vmatpush1.bf16.msra.mxu0 0
    %1217 = vmatprep.subr.bf16.mxu0 0
    %1218 = vmatpush1.bf16.msra.mxu0 0
    %1219 = vmatprep.subr.bf16.mxu0 0
    %1220 = vmatpush1.bf16.msra.mxu0 0
    %1221 = vmatprep.subr.bf16.mxu0 0
    %1222 = vmatpush1.bf16.msra.mxu0 0
    %1223 = vmatprep.subr.bf16.mxu0 0
    %1224 = vmatpush1.bf16.msra.mxu0 0
    %1225 = vmatprep.subr.bf16.mxu0 0
    %1226 = vmatpush1.bf16.msra.mxu0 0
    %1227 = vmatprep.subr.bf16.mxu0 0
    %1228 = vmatpush1.bf16.msra.mxu0 0
    %1229 = vmatprep.subr.bf16.mxu0 0
    %1230 = vmatpush1.bf16.msra.mxu0 0
    %1231 = vmatprep.subr.bf16.mxu0 0
    %1232 = vmatpush1.bf16.msra.mxu0 0
    %1233 = vmatprep.subr.bf16.mxu0 0
    %1234 = vmatpush1.bf16.msra.mxu0 0
    %1235 = vmatprep.subr.bf16.mxu0 0
    %1236 = vmatpush1.bf16.msra.mxu0 0
    %1237 = vmatprep.subr.bf16.mxu0 0
    %1238 = vmatpush1.bf16.msra.mxu0 0
    %1239 = vmatprep.mubr.bf16.mxu0 0
    %1240 = vmatmul.mubr.bf16.gmra.mrb[0].mxu0 %v1201
    %v1241 = vpop.f32.mrb[0].mxu0
    %v1242 = vadd.f32 0.0, %v1241
    %v1243 = vpop.f32.mrb[0].mxu0
    %v1244 = vpop.f32.mrb[0].mxu0
    %v1245 = vpop.f32.mrb[0].mxu0
    %1246 = vdwg.mxu0
    %v1248 = vsel %vm738, %v1193, 0
    %v1251 = vsel %vm1203, %v731, 0
    %1253 = vmatprep.subr.bf16.mxu0 0
    %1254 = vmatpush1.bf16.msra.mxu0 %v1251
    %1255 = vmatprep.subr.bf16.mxu0 0
    %1256 = vmatpush1.bf16.msra.mxu0 0
    %1257 = vmatprep.subr.bf16.mxu0 0
    %1258 = vmatpush1.bf16.msra.mxu0 0
    %1259 = vmatprep.subr.bf16.mxu0 0
    %1260 = vmatpush1.bf16.msra.mxu0 0
    %1261 = vmatprep.subr.bf16.mxu0 0
    %1262 = vmatpush1.bf16.msra.mxu0 0
    %1263 = vmatprep.subr.bf16.mxu0 0
    %1264 = vmatpush1.bf16.msra.mxu0 0
    %1265 = vmatprep.subr.bf16.mxu0 0
    %1266 = vmatpush1.bf16.msra.mxu0 0
    %1267 = vmatprep.subr.bf16.mxu0 0
    %1268 = vmatpush1.bf16.msra.mxu0 0
    %1269 = vmatprep.subr.bf16.mxu0 0
    %1270 = vmatpush1.bf16.msra.mxu0 0
    %1271 = vmatprep.subr.bf16.mxu0 0
    %1272 = vmatpush1.bf16.msra.mxu0 0
    %1273 = vmatprep.subr.bf16.mxu0 0
    %1274 = vmatpush1.bf16.msra.mxu0 0
    %1275 = vmatprep.subr.bf16.mxu0 0
    %1276 = vmatpush1.bf16.msra.mxu0 0
    %1277 = vmatprep.subr.bf16.mxu0 0
    %1278 = vmatpush1.bf16.msra.mxu0 0
    %1279 = vmatprep.subr.bf16.mxu0 0
    %1280 = vmatpush1.bf16.msra.mxu0 0
    %1281 = vmatprep.subr.bf16.mxu0 0
    %1282 = vmatpush1.bf16.msra.mxu0 0
    %1283 = vmatprep.subr.bf16.mxu0 0
    %1284 = vmatpush1.bf16.msra.mxu0 0
    %1285 = vmatprep.mubr.bf16.mxu0 0
    %1286 = vmatmul.mubr.bf16.gmra.mrb[0].mxu0 %v1248
    %v1287 = vpop.f32.mrb[0].mxu0
    %v1288 = vadd.f32 0.0, %v1287
    %v1289 = vpop.f32.mrb[0].mxu0
    %v1290 = vpop.f32.mrb[0].mxu0
    %v1291 = vpop.f32.mrb[0].mxu0
    %1292 = vdwg.mxu0
    %v1294 = vsel %vm738, %v1194, 0
    %v1297 = vsel %vm1203, %v732, 0
    %1299 = vmatprep.subr.bf16.mxu0 0
    %1300 = vmatpush1.bf16.msra.mxu0 %v1297
    %1301 = vmatprep.subr.bf16.mxu0 0
    %1302 = vmatpush1.bf16.msra.mxu0 0
    %1303 = vmatprep.subr.bf16.mxu0 0
    %1304 = vmatpush1.bf16.msra.mxu0 0
    %1305 = vmatprep.subr.bf16.mxu0 0
    %1306 = vmatpush1.bf16.msra.mxu0 0
    %1307 = vmatprep.subr.bf16.mxu0 0
    %1308 = vmatpush1.bf16.msra.mxu0 0
    %1309 = vmatprep.subr.bf16.mxu0 0
    %1310 = vmatpush1.bf16.msra.mxu0 0
    %1311 = vmatprep.subr.bf16.mxu0 0
    %1312 = vmatpush1.bf16.msra.mxu0 0
    %1313 = vmatprep.subr.bf16.mxu0 0
    %1314 = vmatpush1.bf16.msra.mxu0 0
    %1315 = vmatprep.subr.bf16.mxu0 0
    %1316 = vmatpush1.bf16.msra.mxu0 0
    %1317 = vmatprep.subr.bf16.mxu0 0
    %1318 = vmatpush1.bf16.msra.mxu0 0
    %1319 = vmatprep.subr.bf16.mxu0 0
    %1320 = vmatpush1.bf16.msra.mxu0 0
    %1321 = vmatprep.subr.bf16.mxu0 0
    %1322 = vmatpush1.bf16.msra.mxu0 0
    %1323 = vmatprep.subr.bf16.mxu0 0
    %1324 = vmatpush1.bf16.msra.mxu0 0
    %1325 = vmatprep.subr.bf16.mxu0 0
    %1326 = vmatpush1.bf16.msra.mxu0 0
    %1327 = vmatprep.subr.bf16.mxu0 0
    %1328 = vmatpush1.bf16.msra.mxu0 0
    %1329 = vmatprep.subr.bf16.mxu0 0
    %1330 = vmatpush1.bf16.msra.mxu0 0
    %1331 = vmatprep.mubr.bf16.mxu0 0
    %1332 = vmatmul.mubr.bf16.gmra.mrb[0].mxu0 %v1294
    %v1333 = vpop.f32.mrb[0].mxu0
    %v1334 = vadd.f32 0.0, %v1333
    %v1335 = vpop.f32.mrb[0].mxu0
    %v1336 = vpop.f32.mrb[0].mxu0
    %v1337 = vpop.f32.mrb[0].mxu0
    %1338 = vdwg.mxu0
    %v1340 = vsel %vm738, %v1195, 0
    %v1343 = vsel %vm1203, %v733, 0
    %1345 = vmatprep.subr.bf16.mxu0 0
    %1346 = vmatpush1.bf16.msra.mxu0 %v1343
    %1347 = vmatprep.subr.bf16.mxu0 0
    %1348 = vmatpush1.bf16.msra.mxu0 0
    %1349 = vmatprep.subr.bf16.mxu0 0
    %1350 = vmatpush1.bf16.msra.mxu0 0
    %1351 = vmatprep.subr.bf16.mxu0 0
    %1352 = vmatpush1.bf16.msra.mxu0 0
    %1353 = vmatprep.subr.bf16.mxu0 0
    %1354 = vmatpush1.bf16.msra.mxu0 0
    %1355 = vmatprep.subr.bf16.mxu0 0
    %1356 = vmatpush1.bf16.msra.mxu0 0
    %1357 = vmatprep.subr.bf16.mxu0 0
    %1358 = vmatpush1.bf16.msra.mxu0 0
    %1359 = vmatprep.subr.bf16.mxu0 0
    %1360 = vmatpush1.bf16.msra.mxu0 0
    %1361 = vmatprep.subr.bf16.mxu0 0
    %1362 = vmatpush1.bf16.msra.mxu0 0
    %1363 = vmatprep.subr.bf16.mxu0 0
    %1364 = vmatpush1.bf16.msra.mxu0 0
    %1365 = vmatprep.subr.bf16.mxu0 0
    %1366 = vmatpush1.bf16.msra.mxu0 0
    %1367 = vmatprep.subr.bf16.mxu0 0
    %1368 = vmatpush1.bf16.msra.mxu0 0
    %1369 = vmatprep.subr.bf16.mxu0 0
    %1370 = vmatpush1.bf16.msra.mxu0 0
    %1371 = vmatprep.subr.bf16.mxu0 0
    %1372 = vmatpush1.bf16.msra.mxu0 0
    %1373 = vmatprep.subr.bf16.mxu0 0
    %1374 = vmatpush1.bf16.msra.mxu0 0
    %1375 = vmatprep.subr.bf16.mxu0 0
    %1376 = vmatpush1.bf16.msra.mxu0 0
    %1377 = vmatprep.mubr.bf16.mxu0 0
    %1378 = vmatmul.mubr.bf16.gmra.mrb[0].mxu0 %v1340
    %v1379 = vpop.f32.mrb[0].mxu0
    %v1380 = vadd.f32 0.0, %v1379
    %v1381 = vpop.f32.mrb[0].mxu0
    %v1382 = vpop.f32.mrb[0].mxu0
    %v1383 = vpop.f32.mrb[0].mxu0
    %1384 = vdwg.mxu0
    %v1386 = vsel %vm738, %v1196, 0
    %v1389 = vsel %vm1203, %v734, 0
    %1391 = vmatprep.subr.bf16.mxu0 0
    %1392 = vmatpush1.bf16.msra.mxu0 %v1389
    %1393 = vmatprep.subr.bf16.mxu0 0
    %1394 = vmatpush1.bf16.msra.mxu0 0
    %1395 = vmatprep.subr.bf16.mxu0 0
    %1396 = vmatpush1.bf16.msra.mxu0 0
    %1397 = vmatprep.subr.bf16.mxu0 0
    %1398 = vmatpush1.bf16.msra.mxu0 0
    %1399 = vmatprep.subr.bf16.mxu0 0
    %1400 = vmatpush1.bf16.msra.mxu0 0
    %1401 = vmatprep.subr.bf16.mxu0 0
    %1402 = vmatpush1.bf16.msra.mxu0 0
    %1403 = vmatprep.subr.bf16.mxu0 0
    %1404 = vmatpush1.bf16.msra.mxu0 0
    %1405 = vmatprep.subr.bf16.mxu0 0
    %1406 = vmatpush1.bf16.msra.mxu0 0
    %1407 = vmatprep.subr.bf16.mxu0 0
    %1408 = vmatpush1.bf16.msra.mxu0 0
    %1409 = vmatprep.subr.bf16.mxu0 0
    %1410 = vmatpush1.bf16.msra.mxu0 0
    %1411 = vmatprep.subr.bf16.mxu0 0
    %1412 = vmatpush1.bf16.msra.mxu0 0
    %1413 = vmatprep.subr.bf16.mxu0 0
    %1414 = vmatpush1.bf16.msra.mxu0 0
    %1415 = vmatprep.subr.bf16.mxu0 0
    %1416 = vmatpush1.bf16.msra.mxu0 0
    %1417 = vmatprep.subr.bf16.mxu0 0
    %1418 = vmatpush1.bf16.msra.mxu0 0
    %1419 = vmatprep.subr.bf16.mxu0 0
    %1420 = vmatpush1.bf16.msra.mxu0 0
    %1421 = vmatprep.subr.bf16.mxu0 0
    %1422 = vmatpush1.bf16.msra.mxu0 0
    %1423 = vmatprep.mubr.bf16.mxu0 0
    %1424 = vmatmul.mubr.bf16.gmra.mrb[0].mxu0 %v1386
    %v1425 = vpop.f32.mrb[0].mxu0
    %v1426 = vadd.f32 0.0, %v1425
    %v1427 = vpop.f32.mrb[0].mxu0
    %v1428 = vpop.f32.mrb[0].mxu0
    %v1429 = vpop.f32.mrb[0].mxu0
    %1430 = vdwg.mxu0
    %v1432 = vsel %vm738, %v1197, 0
    %v1435 = vsel %vm1203, %v735, 0
    %1437 = vmatprep.subr.bf16.mxu0 0
    %1438 = vmatpush1.bf16.msra.mxu0 %v1435
    %1439 = vmatprep.subr.bf16.mxu0 0
    %1440 = vmatpush1.bf16.msra.mxu0 0
    %1441 = vmatprep.subr.bf16.mxu0 0
    %1442 = vmatpush1.bf16.msra.mxu0 0
    %1443 = vmatprep.subr.bf16.mxu0 0
    %1444 = vmatpush1.bf16.msra.mxu0 0
    %1445 = vmatprep.subr.bf16.mxu0 0
    %1446 = vmatpush1.bf16.msra.mxu0 0
    %1447 = vmatprep.subr.bf16.mxu0 0
    %1448 = vmatpush1.bf16.msra.mxu0 0
    %1449 = vmatprep.subr.bf16.mxu0 0
    %1450 = vmatpush1.bf16.msra.mxu0 0
    %1451 = vmatprep.subr.bf16.mxu0 0
    %1452 = vmatpush1.bf16.msra.mxu0 0
    %1453 = vmatprep.subr.bf16.mxu0 0
    %1454 = vmatpush1.bf16.msra.mxu0 0
    %1455 = vmatprep.subr.bf16.mxu0 0
    %1456 = vmatpush1.bf16.msra.mxu0 0
    %1457 = vmatprep.subr.bf16.mxu0 0
    %1458 = vmatpush1.bf16.msra.mxu0 0
    %1459 = vmatprep.subr.bf16.mxu0 0
    %1460 = vmatpush1.bf16.msra.mxu0 0
    %1461 = vmatprep.subr.bf16.mxu0 0
    %1462 = vmatpush1.bf16.msra.mxu0 0
    %1463 = vmatprep.subr.bf16.mxu0 0
    %1464 = vmatpush1.bf16.msra.mxu0 0
    %1465 = vmatprep.subr.bf16.mxu0 0
    %1466 = vmatpush1.bf16.msra.mxu0 0
    %1467 = vmatprep.subr.bf16.mxu0 0
    %1468 = vmatpush1.bf16.msra.mxu0 0
    %1469 = vmatprep.mubr.bf16.mxu0 0
    %1470 = vmatmul.mubr.bf16.gmra.mrb[0].mxu0 %v1432
    %v1471 = vpop.f32.mrb[0].mxu0
    %v1472 = vadd.f32 0.0, %v1471
    %v1473 = vpop.f32.mrb[0].mxu0
    %v1474 = vpop.f32.mrb[0].mxu0
    %v1475 = vpop.f32.mrb[0].mxu0
    %1476 = vdwg.mxu0
    %v1478 = vsel %vm738, %v1198, 0
    %v1481 = vsel %vm1203, %v736, 0
    %1483 = vmatprep.subr.bf16.mxu0 0
    %1484 = vmatpush1.bf16.msra.mxu0 %v1481
    %1485 = vmatprep.subr.bf16.mxu0 0
    %1486 = vmatpush1.bf16.msra.mxu0 0
    %1487 = vmatprep.subr.bf16.mxu0 0
    %1488 = vmatpush1.bf16.msra.mxu0 0
    %1489 = vmatprep.subr.bf16.mxu0 0
    %1490 = vmatpush1.bf16.msra.mxu0 0
    %1491 = vmatprep.subr.bf16.mxu0 0
    %1492 = vmatpush1.bf16.msra.mxu0 0
    %1493 = vmatprep.subr.bf16.mxu0 0
    %1494 = vmatpush1.bf16.msra.mxu0 0
    %1495 = vmatprep.subr.bf16.mxu0 0
    %1496 = vmatpush1.bf16.msra.mxu0 0
    %1497 = vmatprep.subr.bf16.mxu0 0
    %1498 = vmatpush1.bf16.msra.mxu0 0
    %1499 = vmatprep.subr.bf16.mxu0 0
    %1500 = vmatpush1.bf16.msra.mxu0 0
    %1501 = vmatprep.subr.bf16.mxu0 0
    %1502 = vmatpush1.bf16.msra.mxu0 0
    %1503 = vmatprep.subr.bf16.mxu0 0
    %1504 = vmatpush1.bf16.msra.mxu0 0
    %1505 = vmatprep.subr.bf16.mxu0 0
    %1506 = vmatpush1.bf16.msra.mxu0 0
    %1507 = vmatprep.subr.bf16.mxu0 0
    %1508 = vmatpush1.bf16.msra.mxu0 0
    %1509 = vmatprep.subr.bf16.mxu0 0
    %1510 = vmatpush1.bf16.msra.mxu0 0
    %1511 = vmatprep.subr.bf16.mxu0 0
    %1512 = vmatpush1.bf16.msra.mxu0 0
    %1513 = vmatprep.subr.bf16.mxu0 0
    %1514 = vmatpush1.bf16.msra.mxu0 0
    %1515 = vmatprep.mubr.bf16.mxu0 0
    %1516 = vmatmul.mubr.bf16.gmra.mrb[0].mxu0 %v1478
    %v1517 = vpop.f32.mrb[0].mxu0
    %v1518 = vadd.f32 0.0, %v1517
    %v1519 = vpop.f32.mrb[0].mxu0
    %v1520 = vpop.f32.mrb[0].mxu0
    %v1521 = vpop.f32.mrb[0].mxu0
    %1522 = vdwg.mxu0
    %v1524 = vsel %vm738, %v1199, 0
    %v1527 = vsel %vm1203, %v737, 0
    %1529 = vmatprep.subr.bf16.mxu0 0
    %1530 = vmatpush1.bf16.msra.mxu0 %v1527
    %1531 = vmatprep.subr.bf16.mxu0 0
    %1532 = vmatpush1.bf16.msra.mxu0 0
    %1533 = vmatprep.subr.bf16.mxu0 0
    %1534 = vmatpush1.bf16.msra.mxu0 0
    %1535 = vmatprep.subr.bf16.mxu0 0
    %1536 = vmatpush1.bf16.msra.mxu0 0
    %1537 = vmatprep.subr.bf16.mxu0 0
    %1538 = vmatpush1.bf16.msra.mxu0 0
    %1539 = vmatprep.subr.bf16.mxu0 0
    %1540 = vmatpush1.bf16.msra.mxu0 0
    %1541 = vmatprep.subr.bf16.mxu0 0
    %1542 = vmatpush1.bf16.msra.mxu0 0
    %1543 = vmatprep.subr.bf16.mxu0 0
    %1544 = vmatpush1.bf16.msra.mxu0 0
    %1545 = vmatprep.subr.bf16.mxu0 0
    %1546 = vmatpush1.bf16.msra.mxu0 0
    %1547 = vmatprep.subr.bf16.mxu0 0
    %1548 = vmatpush1.bf16.msra.mxu0 0
    %1549 = vmatprep.subr.bf16.mxu0 0
    %1550 = vmatpush1.bf16.msra.mxu0 0
    %1551 = vmatprep.subr.bf16.mxu0 0
    %1552 = vmatpush1.bf16.msra.mxu0 0
    %1553 = vmatprep.subr.bf16.mxu0 0
    %1554 = vmatpush1.bf16.msra.mxu0 0
    %1555 = vmatprep.subr.bf16.mxu0 0
    %1556 = vmatpush1.bf16.msra.mxu0 0
    %1557 = vmatprep.subr.bf16.mxu0 0
    %1558 = vmatpush1.bf16.msra.mxu0 0
    %1559 = vmatprep.subr.bf16.mxu0 0
    %1560 = vmatpush1.bf16.msra.mxu0 0
    %1561 = vmatprep.mubr.bf16.mxu0 0
    %1562 = vmatmul.mubr.bf16.gmra.mrb[0].mxu0 %v1524
    %v1563 = vpop.f32.mrb[0].mxu0
    %v1564 = vadd.f32 0.0, %v1563
    %v1565 = vpop.f32.mrb[0].mxu0
    %v1566 = vpop.f32.mrb[0].mxu0
    %v1567 = vpop.f32.mrb[0].mxu0
    %1568 = vdwg.mxu0
    %v1569 = vrcp.pop %v1170
    %v1570 = vrcp.pop %v1173
    %v1571 = vrcp.pop %v1176
    %v1572 = vrcp.pop %v1179
    %v1573 = vrcp.pop %v1182
    %v1574 = vrcp.pop %v1185
    %v1575 = vrcp.pop %v1188
    %v1576 = vrcp.pop %v1191
    %v1577 = vmul.f32 %v1242, %v1569
    %v1578 = vmul.f32 %v1288, %v1570
    %v1579 = vmul.f32 %v1334, %v1571
    %v1580 = vmul.f32 %v1380, %v1572
    %v1581 = vmul.f32 %v1426, %v1573
    %v1582 = vmul.f32 %v1472, %v1574
    %v1583 = vmul.f32 %v1518, %v1575
    %v1584 = vmul.f32 %v1564, %v1576
    %v1585 = vpack.c.bf16 %v1578, %v1577
    %v1586 = vpack.c.bf16 %v1580, %v1579
    %v1587 = vpack.c.bf16 %v1582, %v1581
    %v1588 = vpack.c.bf16 %v1584, %v1583
    %v1589 = vld [vmem:[%s2] sm:$0xf]
    %v1590 = vld [vmem:[%s2 + $0x4] sm:$0xf]
    %v1591 = vld [vmem:[%s2 + $0x8] sm:$0xf]
    %v1592 = vld [vmem:[%s2 + $0xc] sm:$0xf]
    %v1594 = vsel %vm738, %v1585, 0
    %v1597 = vsel %vm1203, %v1589, 0
    %1599 = vmatprep.subr.bf16.mxu0 0
    %1600 = vmatpush1.bf16.msra.mxu0 %v1597
    %1601 = vmatprep.subr.bf16.mxu0 0
    %1602 = vmatpush1.bf16.msra.mxu0 0
    %1603 = vmatprep.subr.bf16.mxu0 0
    %1604 = vmatpush1.bf16.msra.mxu0 0
    %1605 = vmatprep.subr.bf16.mxu0 0
    %1606 = vmatpush1.bf16.msra.mxu0 0
    %1607 = vmatprep.subr.bf16.mxu0 0
    %1608 = vmatpush1.bf16.msra.mxu0 0
    %1609 = vmatprep.subr.bf16.mxu0 0
    %1610 = vmatpush1.bf16.msra.mxu0 0
    %1611 = vmatprep.subr.bf16.mxu0 0
    %1612 = vmatpush1.bf16.msra.mxu0 0
    %1613 = vmatprep.subr.bf16.mxu0 0
    %1614 = vmatpush1.bf16.msra.mxu0 0
    %1615 = vmatprep.subr.bf16.mxu0 0
    %1616 = vmatpush1.bf16.msra.mxu0 0
    %1617 = vmatprep.subr.bf16.mxu0 0
    %1618 = vmatpush1.bf16.msra.mxu0 0
    %1619 = vmatprep.subr.bf16.mxu0 0
    %1620 = vmatpush1.bf16.msra.mxu0 0
    %1621 = vmatprep.subr.bf16.mxu0 0
    %1622 = vmatpush1.bf16.msra.mxu0 0
    %1623 = vmatprep.subr.bf16.mxu0 0
    %1624 = vmatpush1.bf16.msra.mxu0 0
    %1625 = vmatprep.subr.bf16.mxu0 0
    %1626 = vmatpush1.bf16.msra.mxu0 0
    %1627 = vmatprep.subr.bf16.mxu0 0
    %1628 = vmatpush1.bf16.msra.mxu0 0
    %1629 = vmatprep.subr.bf16.mxu0 0
    %1630 = vmatpush1.bf16.msra.mxu0 0
    %1631 = vmatprep.mubr.bf16.mxu0 0
    %1632 = vmatmul.mubr.bf16.gmra.mrb[0].mxu0 %v1594
    %v1633 = vpop.f32.mrb[0].mxu0
    %v1634 = vadd.f32 0.0, %v1633
    %v1635 = vpop.f32.mrb[0].mxu0
    %v1636 = vpop.f32.mrb[0].mxu0
    %v1637 = vadd.f32 0.0, %v1636
    %v1638 = vpop.f32.mrb[0].mxu0
    %1639 = vdwg.mxu0
    %v1641 = vsel %vm738, %v1586, 0
    %v1644 = vsel %vm1203, %v1590, 0
    %1646 = vmatprep.subr.bf16.mxu0 0
    %1647 = vmatpush1.bf16.msra.mxu0 %v1644
    %1648 = vmatprep.subr.bf16.mxu0 0
    %1649 = vmatpush1.bf16.msra.mxu0 0
    %1650 = vmatprep.subr.bf16.mxu0 0
    %1651 = vmatpush1.bf16.msra.mxu0 0
    %1652 = vmatprep.subr.bf16.mxu0 0
    %1653 = vmatpush1.bf16.msra.mxu0 0
    %1654 = vmatprep.subr.bf16.mxu0 0
    %1655 = vmatpush1.bf16.msra.mxu0 0
    %1656 = vmatprep.subr.bf16.mxu0 0
    %1657 = vmatpush1.bf16.msra.mxu0 0
    %1658 = vmatprep.subr.bf16.mxu0 0
    %1659 = vmatpush1.bf16.msra.mxu0 0
    %1660 = vmatprep.subr.bf16.mxu0 0
    %1661 = vmatpush1.bf16.msra.mxu0 0
    %1662 = vmatprep.subr.bf16.mxu0 0
    %1663 = vmatpush1.bf16.msra.mxu0 0
    %1664 = vmatprep.subr.bf16.mxu0 0
    %1665 = vmatpush1.bf16.msra.mxu0 0
    %1666 = vmatprep.subr.bf16.mxu0 0
    %1667 = vmatpush1.bf16.msra.mxu0 0
    %1668 = vmatprep.subr.bf16.mxu0 0
    %1669 = vmatpush1.bf16.msra.mxu0 0
    %1670 = vmatprep.subr.bf16.mxu0 0
    %1671 = vmatpush1.bf16.msra.mxu0 0
    %1672 = vmatprep.subr.bf16.mxu0 0
    %1673 = vmatpush1.bf16.msra.mxu0 0
    %1674 = vmatprep.subr.bf16.mxu0 0
    %1675 = vmatpush1.bf16.msra.mxu0 0
    %1676 = vmatprep.subr.bf16.mxu0 0
    %1677 = vmatpush1.bf16.msra.mxu0 0
    %1678 = vmatprep.mubr.bf16.mxu0 0
    %1679 = vmatmul.mubr.bf16.gmra.mrb[0].mxu0 %v1641
    %v1680 = vpop.f32.mrb[0].mxu0
    %v1681 = vadd.f32 0.0, %v1680
    %v1682 = vpop.f32.mrb[0].mxu0
    %v1683 = vpop.f32.mrb[0].mxu0
    %v1684 = vadd.f32 0.0, %v1683
    %v1685 = vpop.f32.mrb[0].mxu0
    %1686 = vdwg.mxu0
    %v1688 = vsel %vm738, %v1587, 0
    %v1691 = vsel %vm1203, %v1591, 0
    %1693 = vmatprep.subr.bf16.mxu0 0
    %1694 = vmatpush1.bf16.msra.mxu0 %v1691
    %1695 = vmatprep.subr.bf16.mxu0 0
    %1696 = vmatpush1.bf16.msra.mxu0 0
    %1697 = vmatprep.subr.bf16.mxu0 0
    %1698 = vmatpush1.bf16.msra.mxu0 0
    %1699 = vmatprep.subr.bf16.mxu0 0
    %1700 = vmatpush1.bf16.msra.mxu0 0
    %1701 = vmatprep.subr.bf16.mxu0 0
    %1702 = vmatpush1.bf16.msra.mxu0 0
    %1703 = vmatprep.subr.bf16.mxu0 0
    %1704 = vmatpush1.bf16.msra.mxu0 0
    %1705 = vmatprep.subr.bf16.mxu0 0
    %1706 = vmatpush1.bf16.msra.mxu0 0
    %1707 = vmatprep.subr.bf16.mxu0 0
    %1708 = vmatpush1.bf16.msra.mxu0 0
    %1709 = vmatprep.subr.bf16.mxu0 0
    %1710 = vmatpush1.bf16.msra.mxu0 0
    %1711 = vmatprep.subr.bf16.mxu0 0
    %1712 = vmatpush1.bf16.msra.mxu0 0
    %1713 = vmatprep.subr.bf16.mxu0 0
    %1714 = vmatpush1.bf16.msra.mxu0 0
    %1715 = vmatprep.subr.bf16.mxu0 0
    %1716 = vmatpush1.bf16.msra.mxu0 0
    %1717 = vmatprep.subr.bf16.mxu0 0
    %1718 = vmatpush1.bf16.msra.mxu0 0
    %1719 = vmatprep.subr.bf16.mxu0 0
    %1720 = vmatpush1.bf16.msra.mxu0 0
    %1721 = vmatprep.subr.bf16.mxu0 0
    %1722 = vmatpush1.bf16.msra.mxu0 0
    %1723 = vmatprep.subr.bf16.mxu0 0
    %1724 = vmatpush1.bf16.msra.mxu0 0
    %1725 = vmatprep.mubr.bf16.mxu0 0
    %1726 = vmatmul.mubr.bf16.gmra.mrb[0].mxu0 %v1688
    %v1727 = vpop.f32.mrb[0].mxu0
    %v1728 = vadd.f32 0.0, %v1727
    %v1729 = vpop.f32.mrb[0].mxu0
    %v1730 = vpop.f32.mrb[0].mxu0
    %v1731 = vadd.f32 0.0, %v1730
    %v1732 = vpop.f32.mrb[0].mxu0
    %1733 = vdwg.mxu0
    %v1735 = vsel %vm738, %v1588, 0
    %v1738 = vsel %vm1203, %v1592, 0
    %1740 = vmatprep.subr.bf16.mxu0 0
    %1741 = vmatpush1.bf16.msra.mxu0 %v1738
    %1742 = vmatprep.subr.bf16.mxu0 0
    %1743 = vmatpush1.bf16.msra.mxu0 0
    %1744 = vmatprep.subr.bf16.mxu0 0
    %1745 = vmatpush1.bf16.msra.mxu0 0
    %1746 = vmatprep.subr.bf16.mxu0 0
    %1747 = vmatpush1.bf16.msra.mxu0 0
    %1748 = vmatprep.subr.bf16.mxu0 0
    %1749 = vmatpush1.bf16.msra.mxu0 0
    %1750 = vmatprep.subr.bf16.mxu0 0
    %1751 = vmatpush1.bf16.msra.mxu0 0
    %1752 = vmatprep.subr.bf16.mxu0 0
    %1753 = vmatpush1.bf16.msra.mxu0 0
    %1754 = vmatprep.subr.bf16.mxu0 0
    %1755 = vmatpush1.bf16.msra.mxu0 0
    %1756 = vmatprep.subr.bf16.mxu0 0
    %1757 = vmatpush1.bf16.msra.mxu0 0
    %1758 = vmatprep.subr.bf16.mxu0 0
    %1759 = vmatpush1.bf16.msra.mxu0 0
    %1760 = vmatprep.subr.bf16.mxu0 0
    %1761 = vmatpush1.bf16.msra.mxu0 0
    %1762 = vmatprep.subr.bf16.mxu0 0
    %1763 = vmatpush1.bf16.msra.mxu0 0
    %1764 = vmatprep.subr.bf16.mxu0 0
    %1765 = vmatpush1.bf16.msra.mxu0 0
    %1766 = vmatprep.subr.bf16.mxu0 0
    %1767 = vmatpush1.bf16.msra.mxu0 0
    %1768 = vmatprep.subr.bf16.mxu0 0
    %1769 = vmatpush1.bf16.msra.mxu0 0
    %1770 = vmatprep.subr.bf16.mxu0 0
    %1771 = vmatpush1.bf16.msra.mxu0 0
    %1772 = vmatprep.mubr.bf16.mxu0 0
    %1773 = vmatmul.mubr.bf16.gmra.mrb[0].mxu0 %v1735
    %v1774 = vpop.f32.mrb[0].mxu0
    %v1775 = vadd.f32 0.0, %v1774
    %v1776 = vpop.f32.mrb[0].mxu0
    %v1777 = vpop.f32.mrb[0].mxu0
    %v1778 = vadd.f32 0.0, %v1777
    %v1779 = vpop.f32.mrb[0].mxu0
    %1780 = vdwg.mxu0
    %v1781 = vsel %vm86, %v1634, 0.0
    %v1782 = vsel %vm86, %v1681, 0.0
    %v1783 = vadd.f32 %v1781, %v1782
    %v1784 = vsel %vm86, %v1728, 0.0
    %v1785 = vadd.f32 %v1783, %v1784
    %v1786 = vsel %vm86, %v1775, 0.0
    %v1787 = vadd.f32 %v1785, %v1786
    %v1788 = vsel %vm86, %v1637, 0.0
    %v1789 = vsel %vm86, %v1684, 0.0
    %v1790 = vadd.f32 %v1788, %v1789
    %v1791 = vsel %vm86, %v1731, 0.0
    %v1792 = vadd.f32 %v1790, %v1791
    %v1793 = vsel %vm86, %v1778, 0.0
    %v1794 = vadd.f32 %v1792, %v1793
    %v1795 = vld [vmem:[%s3] sm:$0x1]
    %v1797 = vlaneseq
    %v1798 = vshrl.u32 %v1797, 7
    %v1799 = vsub.s32 0, %v1798
    %v1800 = vrot.slane %v1795, %v1799
    %v1802 = vadd.f32 %v1787, %v1800
    %v1803 = vadd.f32 %v1794, %v1800
    %1804 = vst.msk [vmem:[#allocation2] sm:$0xff] %vm86, %v1802
    %1805 = vst.msk [vmem:[#allocation2 + $0x8] sm:$0xff] %vm86, %v1803
    // Predicated region
    $region18: #{tpu_custom_call.1} parent=1 // pred_check
      _
    $region19: #{tpu_custom_call.1} parent=1 // pred_check_branch
      %1807 = sbr.rel (0) target = $region21
    $region20: #{tpu_custom_call.1} parent=1 // pred_region
      %s1809 = ssub.s32 256, 256
      %1810 = vsyncadd [#allocation3], %s1809
      %s1811 = sshll.u32 [#allocation2], 4
      %s1812 = int_to_ptr.vmem [resolvable:$true] %s1811
      %1817 = dma.vmem_to_hbm [thread:$0]  %s1812, 256, %s4, [#allocation3], 128, 128, 8
    $region21: #{tpu_custom_call.1} parent=1 // pred_fallthru
      _
    // Predicated region
    $region22: #{tpu_custom_call.1} parent=1 // pred_check
      _
    $region23: #{tpu_custom_call.1} parent=1 // pred_check_branch
      %1819 = sbr.rel (0) target = $region25
    $region24: #{tpu_custom_call.1} parent=1 // pred_region
      %1820 = dma.done [#allocation3], 256
    $region25: #{tpu_custom_call.1} parent=1 // pred_fallthru
      _
    %1821 = vsyncpa [#allocation3], 1

</llo_original>
